<compile_context>
chip_gen: v7x
topology: tpu7x:2x2x1
jax: 0.10.0
libtpu: 0.0.40
codegen_flags: <defaults>
</compile_context>

<pallas_src>
import numpy as np
import jax
import jax.numpy as jnp
from jax.experimental import pallas as pl
from jax.experimental.pallas import tpu as pltpu

LEAKY_SLOPE = 0.01          # nn.LeakyReLU default negative_slope
PAD = 3                     # widest halo needed (7x7 conv -> 3)
VMEM_BUDGET = 12 << 20      # per-step residency target (fits v5e/v7x scoped VMEM)

# SMEM weight-table layout per slab: [w3 (9), w5 (25), w7 (49), b3, b5, b7]
W3_OFF, W5_OFF, W7_OFF, B_OFF = 0, 9, 34, 83
NW = 86


def _round_up(x, m):
    return ((x + m - 1) // m) * m


def _make_kernel(H, Hp, Hout, LT):
    """One lane slab: conv3 -> LReLU -> conv5 -> LReLU -> conv7 -> tanh*pi + skip."""
    BOT = Hp - PAD - H      # zero halo rows below the image interior

    def kernel(x_ref, wt_ref, m_ref, out_ref, act_ref):
        # x_ref: (1, Hp, LT); wt_ref: SMEM (n_slabs, NW); m_ref: (1, 1, LT);
        # out_ref: (1, Hout, LT); act_ref scratch: (Hp, LT).
        s = pl.program_id(0)

        # Zero only the halo rows of the scratch; interior rows are always
        # rewritten before they are read, halo lanes are re-zeroed per layer
        # by the interior-lane select below.
        act_ref[pl.ds(0, PAD), :] = jnp.zeros((PAD, LT), jnp.float32)
        act_ref[pl.ds(PAD + H, BOT), :] = jnp.zeros((BOT, LT), jnp.float32)

        # interior-lane mask, broadcast once per slab (not per layer/tap)
        interior = jnp.broadcast_to(m_ref[0], (H, LT)) > 0.0

        def from_x(r0):
            return x_ref[0, pl.ds(r0, H), :]

        def from_act(r0):
            return act_ref[pl.ds(r0, H), :]

        def conv(load_strip, k, w_off, b_idx):
            # 'same' conv with scalar (SMEM) weights: for each lane offset dx,
            # accumulate the k row taps first (VALU scalar*vector FMAs), then
            # apply ONE lane roll (XLU).  Rolls per conv: k-1 instead of
            # k*(k-1).  Valid because the weight is constant across the slab
            # and the 3-lane gutters equal the largest half-kernel.
            # TODO(synk): for very tall images (H >= ~128) a banded (H,Hp) x
            # (Hp,LT) MXU matmul per dx would replace the dy FMA chain.
            p = (k - 1) // 2
            acc0 = jnp.zeros((H, LT), jnp.float32)
            acc1 = jnp.zeros((H, LT), jnp.float32)
            for dx in range(k):                                # static, unrolled
                part = wt_ref[s, w_off + dx] * load_strip(PAD - p)
                for dy in range(1, k):
                    part = part + wt_ref[s, w_off + dy * k + dx] * \
                        load_strip(PAD - p + dy)
                shift = (p - dx) % LT
                if shift:
                    part = pltpu.roll(part, shift, axis=1)
                if dx % 2 == 0:
                    acc0 = acc0 + part
                else:
                    acc1 = acc1 + part
            return acc0 + acc1 + wt_ref[s, B_OFF + b_idx]

        # conv 3x3 -> LeakyReLU (input already zero-padded by the wrapper)
        c1 = conv(from_x, 3, W3_OFF, 0)
        a1 = jnp.where(interior, jnp.where(c1 > 0, c1, LEAKY_SLOPE * c1), 0.0)
        act_ref[pl.ds(PAD, H), :] = a1

        # conv 5x5 -> LeakyReLU
        c2 = conv(from_act, 5, W5_OFF, 1)
        a2 = jnp.where(interior, jnp.where(c2 > 0, c2, LEAKY_SLOPE * c2), 0.0)
        act_ref[pl.ds(PAD, H), :] = a2

        # conv 7x7 -> tanh * pi + skip (only interior rows go to the output)
        c3 = conv(from_act, 7, W7_OFF, 2)
        x_in = x_ref[0, pl.ds(PAD, H), :]
        out_ref[0, pl.ds(0, H), :] = jnp.tanh(c3) * jnp.float32(np.pi) + x_in
        if Hout > H:   # keep the returned buffer fully initialized
            out_ref[0, pl.ds(H, Hout - H), :] = jnp.zeros((Hout - H, LT),
                                                          jnp.float32)

    return kernel


def fused_rgb_branches(imgs, wt_branch):
    """imgs: (3, N, H, W) f32 (branch-major r/g/b); wt_branch: (3, NW) f32.
    Returns (3, N, H, W)."""
    _, N, H, W = imgs.shape
    Wp = W + 2 * PAD
    Hp = _round_up(H + 2 * PAD, 8)
    Hout = _round_up(H, 8)

    # ---- slab sizing from a cross-generation VMEM budget:
    #      residency/step ~ (2*x + act)*Hp + 2*out*Hout per lane (double-buffered).
    bytes_per_lane = (3 * Hp + 2 * Hout + 2) * 4
    lt_cap = max(128, (VMEM_BUDGET // bytes_per_lane) // 128 * 128)
    per = max(1, min(N, lt_cap // Wp))        # images per slab (single branch)
    LT = max(128, _round_up(per * Wp, 128))
    spb = -(-N // per)                        # slabs per branch
    n_slabs = 3 * spb                         # >= 3 grid steps (v7x megacore)

    # ---- pack: each slab holds `per` images of ONE branch, each image in its
    #      own Wp-wide lane band with 3-lane zero gutters (lane-dense output).
    x = jnp.pad(imgs, ((0, 0), (0, spb * per - N),
                       (PAD, Hp - H - PAD), (PAD, Wp - W - PAD)))
    x = x.reshape(n_slabs, per, Hp, Wp).transpose(0, 2, 1, 3)
    x = x.reshape(n_slabs, Hp, per * Wp)
    x = jnp.pad(x, ((0, 0), (0, 0), (0, LT - per * Wp)))

    # ---- per-slab scalar weights (read from SMEM inside the kernel)
    wt = wt_branch[np.repeat(np.arange(3), spb)]               # (n_slabs, NW)

    # ---- static interior-lane mask, identical for every slab
    lane = np.arange(LT)
    slot, col = lane // Wp, lane % Wp
    mask_np = (slot < per) & (col >= PAD) & (col < PAD + W)
    mask = jnp.asarray(mask_np.astype(np.float32))[None, None, :]   # (1,1,LT)

    resident = (3 * Hp + 2 * Hout + 2) * LT * 4
    vmem_limit = int(min(max(2 * resident, 32 << 20), 48 << 20))

    taps = 9 + 25 + 49
    cost = pl.CostEstimate(
        flops=int((2 * taps + 12) * 3 * N * H * W),
        transcendentals=int(3 * N * H * W),
        bytes_accessed=int(4 * (n_slabs * (Hp + Hout + 1) * LT + n_slabs * NW)))

    out_packed = pl.pallas_call(
        _make_kernel(H, Hp, Hout, LT),
        out_shape=jax.ShapeDtypeStruct((n_slabs, Hout, LT), jnp.float32),
        grid=(n_slabs,),
        in_specs=[
            pl.BlockSpec((1, Hp, LT), lambda s: (s, 0, 0)),
            pl.BlockSpec(memory_space=pltpu.MemorySpace.SMEM),   # scalar weights
            pl.BlockSpec((1, 1, LT), lambda s: (0, 0, 0)),       # shared mask
        ],
        out_specs=pl.BlockSpec((1, Hout, LT), lambda s: (s, 0, 0)),
        scratch_shapes=[pltpu.VMEM((Hp, LT), jnp.float32)],
        compiler_params=pltpu.CompilerParams(
            dimension_semantics=("parallel",),
            vmem_limit_bytes=vmem_limit),
        cost_estimate=cost,
    )(x, wt, mask)

    # ---- unpack interiors back to (3, N, H, W)
    o = out_packed[:, :H, :per * Wp].reshape(n_slabs, H, per, Wp)
    o = o.transpose(0, 2, 1, 3).reshape(3, spb * per, H, Wp)
    return o[:, :N, :, PAD:PAD + W]


def cnn_dpe_skip_forward(params, r, g, b, s0, s1, s2):
    """r, g, b: NCHW (N, 1, H, W) float32. s0, s1, s2: (N, 1) float32."""
    imgs = jnp.stack([r[:, 0], g[:, 0], b[:, 0]], axis=0)      # (3, N, H, W)

    rows = []
    for name in ("r", "g", "b"):
        rows.append(jnp.concatenate([
            params[f"w3{name}"].reshape(-1),
            params[f"w5{name}"].reshape(-1),
            params[f"w7{name}"].reshape(-1),
            jnp.stack([params[f"b3{name}"], params[f"b5{name}"],
                       params[f"b7{name}"]]),
        ]))
    wt_branch = jnp.stack(rows).astype(jnp.float32)             # (3, NW)

    o = fused_rgb_branches(imgs, wt_branch)                     # (3, N, H, W)
    r3 = o[0][:, None, :, :]
    g3 = o[1][:, None, :, :]
    b3 = o[2][:, None, :, :]

    # Linear(1,1,bias=False) with 1-D weight [1.0]: F.linear contracts the
    # trailing singleton dim -> shape (N,). Pure glue, kept in plain JAX.
    w_lin = params["w_lin"]
    return r3, g3, b3, s0 @ w_lin, s1 @ w_lin, s2 @ w_lin


def init_params(key):
    """Deterministic init mirroring the PyTorch module shapes.
    Conv weights: xavier_uniform (gain=1); conv biases: PyTorch default uniform."""
    params = {}
    keys = jax.random.split(key, 18)
    i = 0
    for name in ("r", "g", "b"):
        for k in (3, 5, 7):
            fan = k * k  # fan_in == fan_out for 1->1 channel kxk conv
            bw = float(np.sqrt(6.0 / (2.0 * fan)))
            params[f"w{k}{name}"] = jax.random.uniform(
                keys[i], (k, k), jnp.float32, -bw, bw); i += 1
            bb = float(1.0 / np.sqrt(fan))
            params[f"b{k}{name}"] = jax.random.uniform(
                keys[i], (), jnp.float32, -bb, bb); i += 1
    # linear1/2/3 weights are fixed to [1.0] (no bias) in the module
    params["w_lin"] = jnp.ones((1,), jnp.float32)
    return params


# ---------------- pure-JAX reference (same math, no Pallas) ----------------
def _ref_conv(img, w, bias):
    k = w.shape[0]
    p = (k - 1) // 2
    H, W = img.shape
    xp = jnp.pad(img, ((p, p), (p, p)))
    acc = jnp.zeros_like(img)
    for dy in range(k):
        for dx in range(k):
            acc = acc + w[dy, dx] * xp[dy:dy + H, dx:dx + W]
    return acc + bias


def _ref_branch(x_nhw, w3, w5, w7, b3, b5, b7):
    def single(x):
        c1 = _ref_conv(x, w3, b3)
        a1 = jnp.where(c1 > 0, c1, LEAKY_SLOPE * c1)
        c2 = _ref_conv(a1, w5, b5)
        a2 = jnp.where(c2 > 0, c2, LEAKY_SLOPE * c2)
        c3 = _ref_conv(a2, w7, b7)
        return jnp.tanh(c3) * jnp.float32(np.pi) + x
    return jax.vmap(single)(x_nhw)


if __name__ == "__main__":
    key = jax.random.PRNGKey(0)
    pkey, dkey = jax.random.split(key)
    params = init_params(pkey)

    N, H, W = 2, 16, 16
    ks = jax.random.split(dkey, 6)
    r = jax.random.normal(ks[0], (N, 1, H, W), jnp.float32)
    g = jax.random.normal(ks[1], (N, 1, H, W), jnp.float32)
    b = jax.random.normal(ks[2], (N, 1, H, W), jnp.float32)
    s0 = jax.random.normal(ks[3], (N, 1), jnp.float32)
    s1 = jax.random.normal(ks[4], (N, 1), jnp.float32)
    s2 = jax.random.normal(ks[5], (N, 1), jnp.float32)

    fwd = jax.jit(cnn_dpe_skip_forward)
    out = fwd(params, r, g, b, s0, s1, s2)
    out = jax.block_until_ready(out)
    r3, g3, b3, s0o, s1o, s2o = out

    # sanity check against a pure-JAX reference with identical math
    ok = True
    for name, img, res in (("r", r, r3), ("g", g, g3), ("b", b, b3)):
        ref = _ref_branch(
            img[:, 0], params[f"w3{name}"], params[f"w5{name}"], params[f"w7{name}"],
            params[f"b3{name}"], params[f"b5{name}"], params[f"b7{name}"])
        ok &= bool(np.allclose(np.asarray(res[:, 0]), np.asarray(ref),
                               rtol=1e-3, atol=1e-3))
    ok &= r3.shape == (N, 1, H, W) and s0o.shape == (N,)
    assert ok, "Pallas kernel output mismatch vs reference"
    print("KERNEL_OK")
</pallas_src>

<mosaic_0001>
module attributes {stable_mosaic.version = 11 : i64} {
  func.func @kernel(%arg0: i32, %arg1: memref<1x24x128xf32, #tpu.memory_space<vmem>>, %arg2: memref<3x86xf32, #tpu.memory_space<smem>>, %arg3: memref<1x1x128xf32, #tpu.memory_space<vmem>>, %arg4: memref<1x16x128xf32, #tpu.memory_space<vmem>>, %arg5: memref<24x128xf32, #tpu.memory_space<vmem>>) attributes {dimension_semantics = [#tpu.dimension_semantics<parallel>], iteration_bounds = array<i64: 3>, scalar_prefetch = 0 : i64, scratch_operands = 1 : i64, tpu.core_type = #tpu.core_type<tc>, window_params = [{transform_indices = @transform_0, window_bounds = array<i64: 1, 24, 128>}, {transform_indices = @transform_1, window_bounds = array<i64: 3, 86>}, {pipeline_mode = #tpu.pipeline_mode<synchronous>, transform_indices = @transform_2, window_bounds = array<i64: 1, 1, 128>}, {transform_indices = @transform_3, window_bounds = array<i64: 1, 16, 128>}]} {
    %cst = arith.constant 0.000000e+00 : f32
    %0 = vector.broadcast %cst : f32 to vector<3x128xf32>
    %c0 = arith.constant 0 : index
    %c0_0 = arith.constant 0 : index
    %1 = vector.load %arg5[%c0, %c0_0] : memref<24x128xf32, #tpu.memory_space<vmem>>, vector<3x128xf32>
    tpu.vector_store %arg5[%c0, %c0_0], %0 {strides = array<i32>} : memref<24x128xf32, #tpu.memory_space<vmem>>, vector<3x128xf32>,
    %cst_1 = arith.constant 0.000000e+00 : f32
    %2 = vector.broadcast %cst_1 : f32 to vector<5x128xf32>
    %c19 = arith.constant 19 : index
    %c0_2 = arith.constant 0 : index
    %3 = vector.load %arg5[%c19, %c0_2] : memref<24x128xf32, #tpu.memory_space<vmem>>, vector<5x128xf32>
    tpu.vector_store %arg5[%c19, %c0_2], %2 {strides = array<i32>} : memref<24x128xf32, #tpu.memory_space<vmem>>, vector<5x128xf32>,
    %c0_3 = arith.constant 0 : index
    %c0_4 = arith.constant 0 : index
    %c0_5 = arith.constant 0 : index
    %4 = vector.load %arg3[%c0_3, %c0_4, %c0_5] : memref<1x1x128xf32, #tpu.memory_space<vmem>>, vector<1x1x128xf32>
    %5 = vector.shape_cast %4 : vector<1x1x128xf32> to vector<1x128xf32>
    %6 = vector.shape_cast %5 : vector<1x128xf32> to vector<1x128xf32>
    %7 = vector.broadcast %6 : vector<1x128xf32> to vector<16x128xf32>
    %cst_6 = arith.constant 0.000000e+00 : f32
    %8 = vector.broadcast %cst_6 : f32 to vector<16x128xf32>
    %9 = arith.cmpf ogt, %7, %8 : vector<16x128xf32>
    %cst_7 = arith.constant 0.000000e+00 : f32
    %10 = vector.broadcast %cst_7 : f32 to vector<16x128xf32>
    %cst_8 = arith.constant 0.000000e+00 : f32
    %11 = vector.broadcast %cst_8 : f32 to vector<16x128xf32>
    %12 = arith.index_cast %arg0 : i32 to index
    %c0_9 = arith.constant 0 : index
    %13 = memref.load %arg2[%12, %c0_9] : memref<3x86xf32, #tpu.memory_space<smem>>
    %c0_10 = arith.constant 0 : index
    %c2 = arith.constant 2 : index
    %c0_11 = arith.constant 0 : index
    %14 = vector.load %arg1[%c0_10, %c2, %c0_11] : memref<1x24x128xf32, #tpu.memory_space<vmem>>, vector<1x16x128xf32>
    %15 = vector.shape_cast %14 : vector<1x16x128xf32> to vector<16x128xf32>
    %16 = vector.broadcast %13 : f32 to vector<16x128xf32>
    %17 = arith.mulf %16, %15 : vector<16x128xf32>
    %18 = arith.index_cast %arg0 : i32 to index
    %c3 = arith.constant 3 : index
    %19 = memref.load %arg2[%18, %c3] : memref<3x86xf32, #tpu.memory_space<smem>>
    %c0_12 = arith.constant 0 : index
    %c3_13 = arith.constant 3 : index
    %c0_14 = arith.constant 0 : index
    %20 = vector.load %arg1[%c0_12, %c3_13, %c0_14] : memref<1x24x128xf32, #tpu.memory_space<vmem>>, vector<1x16x128xf32>
    %21 = vector.shape_cast %20 : vector<1x16x128xf32> to vector<16x128xf32>
    %22 = vector.broadcast %19 : f32 to vector<16x128xf32>
    %23 = arith.mulf %22, %21 : vector<16x128xf32>
    %24 = arith.addf %17, %23 : vector<16x128xf32>
    %25 = arith.index_cast %arg0 : i32 to index
    %c6 = arith.constant 6 : index
    %26 = memref.load %arg2[%25, %c6] : memref<3x86xf32, #tpu.memory_space<smem>>
    %c0_15 = arith.constant 0 : index
    %c4 = arith.constant 4 : index
    %c0_16 = arith.constant 0 : index
    %27 = vector.load %arg1[%c0_15, %c4, %c0_16] : memref<1x24x128xf32, #tpu.memory_space<vmem>>, vector<1x16x128xf32>
    %28 = vector.shape_cast %27 : vector<1x16x128xf32> to vector<16x128xf32>
    %29 = vector.broadcast %26 : f32 to vector<16x128xf32>
    %30 = arith.mulf %29, %28 : vector<16x128xf32>
    %31 = arith.addf %24, %30 : vector<16x128xf32>
    %c1_i32 = arith.constant 1 : i32
    %32 = tpu.dynamic_rotate %31 by %c1_i32 dim 1 : vector<16x128xf32>, i32 -> vector<16x128xf32>
    %33 = arith.addf %10, %32 : vector<16x128xf32>
    %34 = arith.index_cast %arg0 : i32 to index
    %c1 = arith.constant 1 : index
    %35 = memref.load %arg2[%34, %c1] : memref<3x86xf32, #tpu.memory_space<smem>>
    %c0_17 = arith.constant 0 : index
    %c2_18 = arith.constant 2 : index
    %c0_19 = arith.constant 0 : index
    %36 = vector.load %arg1[%c0_17, %c2_18, %c0_19] : memref<1x24x128xf32, #tpu.memory_space<vmem>>, vector<1x16x128xf32>
    %37 = vector.shape_cast %36 : vector<1x16x128xf32> to vector<16x128xf32>
    %38 = vector.broadcast %35 : f32 to vector<16x128xf32>
    %39 = arith.mulf %38, %37 : vector<16x128xf32>
    %40 = arith.index_cast %arg0 : i32 to index
    %c4_20 = arith.constant 4 : index
    %41 = memref.load %arg2[%40, %c4_20] : memref<3x86xf32, #tpu.memory_space<smem>>
    %c0_21 = arith.constant 0 : index
    %c3_22 = arith.constant 3 : index
    %c0_23 = arith.constant 0 : index
    %42 = vector.load %arg1[%c0_21, %c3_22, %c0_23] : memref<1x24x128xf32, #tpu.memory_space<vmem>>, vector<1x16x128xf32>
    %43 = vector.shape_cast %42 : vector<1x16x128xf32> to vector<16x128xf32>
    %44 = vector.broadcast %41 : f32 to vector<16x128xf32>
    %45 = arith.mulf %44, %43 : vector<16x128xf32>
    %46 = arith.addf %39, %45 : vector<16x128xf32>
    %47 = arith.index_cast %arg0 : i32 to index
    %c7 = arith.constant 7 : index
    %48 = memref.load %arg2[%47, %c7] : memref<3x86xf32, #tpu.memory_space<smem>>
    %c0_24 = arith.constant 0 : index
    %c4_25 = arith.constant 4 : index
    %c0_26 = arith.constant 0 : index
    %49 = vector.load %arg1[%c0_24, %c4_25, %c0_26] : memref<1x24x128xf32, #tpu.memory_space<vmem>>, vector<1x16x128xf32>
    %50 = vector.shape_cast %49 : vector<1x16x128xf32> to vector<16x128xf32>
    %51 = vector.broadcast %48 : f32 to vector<16x128xf32>
    %52 = arith.mulf %51, %50 : vector<16x128xf32>
    %53 = arith.addf %46, %52 : vector<16x128xf32>
    %54 = arith.addf %11, %53 : vector<16x128xf32>
    %55 = arith.index_cast %arg0 : i32 to index
    %c2_27 = arith.constant 2 : index
    %56 = memref.load %arg2[%55, %c2_27] : memref<3x86xf32, #tpu.memory_space<smem>>
    %c0_28 = arith.constant 0 : index
    %c2_29 = arith.constant 2 : index
    %c0_30 = arith.constant 0 : index
    %57 = vector.load %arg1[%c0_28, %c2_29, %c0_30] : memref<1x24x128xf32, #tpu.memory_space<vmem>>, vector<1x16x128xf32>
    %58 = vector.shape_cast %57 : vector<1x16x128xf32> to vector<16x128xf32>
    %59 = vector.broadcast %56 : f32 to vector<16x128xf32>
    %60 = arith.mulf %59, %58 : vector<16x128xf32>
    %61 = arith.index_cast %arg0 : i32 to index
    %c5 = arith.constant 5 : index
    %62 = memref.load %arg2[%61, %c5] : memref<3x86xf32, #tpu.memory_space<smem>>
    %c0_31 = arith.constant 0 : index
    %c3_32 = arith.constant 3 : index
    %c0_33 = arith.constant 0 : index
    %63 = vector.load %arg1[%c0_31, %c3_32, %c0_33] : memref<1x24x128xf32, #tpu.memory_space<vmem>>, vector<1x16x128xf32>
    %64 = vector.shape_cast %63 : vector<1x16x128xf32> to vector<16x128xf32>
    %65 = vector.broadcast %62 : f32 to vector<16x128xf32>
    %66 = arith.mulf %65, %64 : vector<16x128xf32>
    %67 = arith.addf %60, %66 : vector<16x128xf32>
    %68 = arith.index_cast %arg0 : i32 to index
    %c8 = arith.constant 8 : index
    %69 = memref.load %arg2[%68, %c8] : memref<3x86xf32, #tpu.memory_space<smem>>
    %c0_34 = arith.constant 0 : index
    %c4_35 = arith.constant 4 : index
    %c0_36 = arith.constant 0 : index
    %70 = vector.load %arg1[%c0_34, %c4_35, %c0_36] : memref<1x24x128xf32, #tpu.memory_space<vmem>>, vector<1x16x128xf32>
    %71 = vector.shape_cast %70 : vector<1x16x128xf32> to vector<16x128xf32>
    %72 = vector.broadcast %69 : f32 to vector<16x128xf32>
    %73 = arith.mulf %72, %71 : vector<16x128xf32>
    %74 = arith.addf %67, %73 : vector<16x128xf32>
    %c127_i32 = arith.constant 127 : i32
    %75 = tpu.dynamic_rotate %74 by %c127_i32 dim 1 : vector<16x128xf32>, i32 -> vector<16x128xf32>
    %76 = arith.addf %33, %75 : vector<16x128xf32>
    %77 = arith.addf %76, %54 : vector<16x128xf32>
    %78 = arith.index_cast %arg0 : i32 to index
    %c83 = arith.constant 83 : index
    %79 = memref.load %arg2[%78, %c83] : memref<3x86xf32, #tpu.memory_space<smem>>
    %80 = vector.broadcast %79 : f32 to vector<16x128xf32>
    %81 = arith.addf %77, %80 : vector<16x128xf32>
    %cst_37 = arith.constant 0.000000e+00 : f32
    %82 = vector.broadcast %cst_37 : f32 to vector<16x128xf32>
    %83 = arith.cmpf ogt, %81, %82 : vector<16x128xf32>
    %cst_38 = arith.constant 0.00999999977 : f32
    %84 = vector.broadcast %cst_38 : f32 to vector<16x128xf32>
    %85 = arith.mulf %84, %81 : vector<16x128xf32>
    %86 = arith.select %83, %81, %85 : vector<16x128xi1>, vector<16x128xf32>
    %cst_39 = arith.constant 0.000000e+00 : f32
    %87 = vector.broadcast %cst_39 : f32 to vector<16x128xf32>
    %88 = arith.select %9, %86, %87 : vector<16x128xi1>, vector<16x128xf32>
    %c3_40 = arith.constant 3 : index
    %c0_41 = arith.constant 0 : index
    %89 = vector.load %arg5[%c3_40, %c0_41] : memref<24x128xf32, #tpu.memory_space<vmem>>, vector<16x128xf32>
    tpu.vector_store %arg5[%c3_40, %c0_41], %88 {strides = array<i32>} : memref<24x128xf32, #tpu.memory_space<vmem>>, vector<16x128xf32>,
    %cst_42 = arith.constant 0.000000e+00 : f32
    %90 = vector.broadcast %cst_42 : f32 to vector<16x128xf32>
    %cst_43 = arith.constant 0.000000e+00 : f32
    %91 = vector.broadcast %cst_43 : f32 to vector<16x128xf32>
    %92 = arith.index_cast %arg0 : i32 to index
    %c9 = arith.constant 9 : index
    %93 = memref.load %arg2[%92, %c9] : memref<3x86xf32, #tpu.memory_space<smem>>
    %c1_44 = arith.constant 1 : index
    %c0_45 = arith.constant 0 : index
    %94 = vector.load %arg5[%c1_44, %c0_45] : memref<24x128xf32, #tpu.memory_space<vmem>>, vector<16x128xf32>
    %95 = vector.broadcast %93 : f32 to vector<16x128xf32>
    %96 = arith.mulf %95, %94 : vector<16x128xf32>
    %97 = arith.index_cast %arg0 : i32 to index
    %c14 = arith.constant 14 : index
    %98 = memref.load %arg2[%97, %c14] : memref<3x86xf32, #tpu.memory_space<smem>>
    %c2_46 = arith.constant 2 : index
    %c0_47 = arith.constant 0 : index
    %99 = vector.load %arg5[%c2_46, %c0_47] : memref<24x128xf32, #tpu.memory_space<vmem>>, vector<16x128xf32>
    %100 = vector.broadcast %98 : f32 to vector<16x128xf32>
    %101 = arith.mulf %100, %99 : vector<16x128xf32>
    %102 = arith.addf %96, %101 : vector<16x128xf32>
    %103 = arith.index_cast %arg0 : i32 to index
    %c19_48 = arith.constant 19 : index
    %104 = memref.load %arg2[%103, %c19_48] : memref<3x86xf32, #tpu.memory_space<smem>>
    %c3_49 = arith.constant 3 : index
    %c0_50 = arith.constant 0 : index
    %105 = vector.load %arg5[%c3_49, %c0_50] : memref<24x128xf32, #tpu.memory_space<vmem>>, vector<16x128xf32>
    %106 = vector.broadcast %104 : f32 to vector<16x128xf32>
    %107 = arith.mulf %106, %105 : vector<16x128xf32>
    %108 = arith.addf %102, %107 : vector<16x128xf32>
    %109 = arith.index_cast %arg0 : i32 to index
    %c24 = arith.constant 24 : index
    %110 = memref.load %arg2[%109, %c24] : memref<3x86xf32, #tpu.memory_space<smem>>
    %c4_51 = arith.constant 4 : index
    %c0_52 = arith.constant 0 : index
    %111 = vector.load %arg5[%c4_51, %c0_52] : memref<24x128xf32, #tpu.memory_space<vmem>>, vector<16x128xf32>
    %112 = vector.broadcast %110 : f32 to vector<16x128xf32>
    %113 = arith.mulf %112, %111 : vector<16x128xf32>
    %114 = arith.addf %108, %113 : vector<16x128xf32>
    %115 = arith.index_cast %arg0 : i32 to index
    %c29 = arith.constant 29 : index
    %116 = memref.load %arg2[%115, %c29] : memref<3x86xf32, #tpu.memory_space<smem>>
    %c5_53 = arith.constant 5 : index
    %c0_54 = arith.constant 0 : index
    %117 = vector.load %arg5[%c5_53, %c0_54] : memref<24x128xf32, #tpu.memory_space<vmem>>, vector<16x128xf32>
    %118 = vector.broadcast %116 : f32 to vector<16x128xf32>
    %119 = arith.mulf %118, %117 : vector<16x128xf32>
    %120 = arith.addf %114, %119 : vector<16x128xf32>
    %c2_i32 = arith.constant 2 : i32
    %121 = tpu.dynamic_rotate %120 by %c2_i32 dim 1 : vector<16x128xf32>, i32 -> vector<16x128xf32>
    %122 = arith.addf %90, %121 : vector<16x128xf32>
    %123 = arith.index_cast %arg0 : i32 to index
    %c10 = arith.constant 10 : index
    %124 = memref.load %arg2[%123, %c10] : memref<3x86xf32, #tpu.memory_space<smem>>
    %c1_55 = arith.constant 1 : index
    %c0_56 = arith.constant 0 : index
    %125 = vector.load %arg5[%c1_55, %c0_56] : memref<24x128xf32, #tpu.memory_space<vmem>>, vector<16x128xf32>
    %126 = vector.broadcast %124 : f32 to vector<16x128xf32>
    %127 = arith.mulf %126, %125 : vector<16x128xf32>
    %128 = arith.index_cast %arg0 : i32 to index
    %c15 = arith.constant 15 : index
    %129 = memref.load %arg2[%128, %c15] : memref<3x86xf32, #tpu.memory_space<smem>>
    %c2_57 = arith.constant 2 : index
    %c0_58 = arith.constant 0 : index
    %130 = vector.load %arg5[%c2_57, %c0_58] : memref<24x128xf32, #tpu.memory_space<vmem>>, vector<16x128xf32>
    %131 = vector.broadcast %129 : f32 to vector<16x128xf32>
    %132 = arith.mulf %131, %130 : vector<16x128xf32>
    %133 = arith.addf %127, %132 : vector<16x128xf32>
    %134 = arith.index_cast %arg0 : i32 to index
    %c20 = arith.constant 20 : index
    %135 = memref.load %arg2[%134, %c20] : memref<3x86xf32, #tpu.memory_space<smem>>
    %c3_59 = arith.constant 3 : index
    %c0_60 = arith.constant 0 : index
    %136 = vector.load %arg5[%c3_59, %c0_60] : memref<24x128xf32, #tpu.memory_space<vmem>>, vector<16x128xf32>
    %137 = vector.broadcast %135 : f32 to vector<16x128xf32>
    %138 = arith.mulf %137, %136 : vector<16x128xf32>
    %139 = arith.addf %133, %138 : vector<16x128xf32>
    %140 = arith.index_cast %arg0 : i32 to index
    %c25 = arith.constant 25 : index
    %141 = memref.load %arg2[%140, %c25] : memref<3x86xf32, #tpu.memory_space<smem>>
    %c4_61 = arith.constant 4 : index
    %c0_62 = arith.constant 0 : index
    %142 = vector.load %arg5[%c4_61, %c0_62] : memref<24x128xf32, #tpu.memory_space<vmem>>, vector<16x128xf32>
    %143 = vector.broadcast %141 : f32 to vector<16x128xf32>
    %144 = arith.mulf %143, %142 : vector<16x128xf32>
    %145 = arith.addf %139, %144 : vector<16x128xf32>
    %146 = arith.index_cast %arg0 : i32 to index
    %c30 = arith.constant 30 : index
    %147 = memref.load %arg2[%146, %c30] : memref<3x86xf32, #tpu.memory_space<smem>>
    %c5_63 = arith.constant 5 : index
    %c0_64 = arith.constant 0 : index
    %148 = vector.load %arg5[%c5_63, %c0_64] : memref<24x128xf32, #tpu.memory_space<vmem>>, vector<16x128xf32>
    %149 = vector.broadcast %147 : f32 to vector<16x128xf32>
    %150 = arith.mulf %149, %148 : vector<16x128xf32>
    %151 = arith.addf %145, %150 : vector<16x128xf32>
    %c1_i32_65 = arith.constant 1 : i32
    %152 = tpu.dynamic_rotate %151 by %c1_i32_65 dim 1 : vector<16x128xf32>, i32 -> vector<16x128xf32>
    %153 = arith.addf %91, %152 : vector<16x128xf32>
    %154 = arith.index_cast %arg0 : i32 to index
    %c11 = arith.constant 11 : index
    %155 = memref.load %arg2[%154, %c11] : memref<3x86xf32, #tpu.memory_space<smem>>
    %c1_66 = arith.constant 1 : index
    %c0_67 = arith.constant 0 : index
    %156 = vector.load %arg5[%c1_66, %c0_67] : memref<24x128xf32, #tpu.memory_space<vmem>>, vector<16x128xf32>
    %157 = vector.broadcast %155 : f32 to vector<16x128xf32>
    %158 = arith.mulf %157, %156 : vector<16x128xf32>
    %159 = arith.index_cast %arg0 : i32 to index
    %c16 = arith.constant 16 : index
    %160 = memref.load %arg2[%159, %c16] : memref<3x86xf32, #tpu.memory_space<smem>>
    %c2_68 = arith.constant 2 : index
    %c0_69 = arith.constant 0 : index
    %161 = vector.load %arg5[%c2_68, %c0_69] : memref<24x128xf32, #tpu.memory_space<vmem>>, vector<16x128xf32>
    %162 = vector.broadcast %160 : f32 to vector<16x128xf32>
    %163 = arith.mulf %162, %161 : vector<16x128xf32>
    %164 = arith.addf %158, %163 : vector<16x128xf32>
    %165 = arith.index_cast %arg0 : i32 to index
    %c21 = arith.constant 21 : index
    %166 = memref.load %arg2[%165, %c21] : memref<3x86xf32, #tpu.memory_space<smem>>
    %c3_70 = arith.constant 3 : index
    %c0_71 = arith.constant 0 : index
    %167 = vector.load %arg5[%c3_70, %c0_71] : memref<24x128xf32, #tpu.memory_space<vmem>>, vector<16x128xf32>
    %168 = vector.broadcast %166 : f32 to vector<16x128xf32>
    %169 = arith.mulf %168, %167 : vector<16x128xf32>
    %170 = arith.addf %164, %169 : vector<16x128xf32>
    %171 = arith.index_cast %arg0 : i32 to index
    %c26 = arith.constant 26 : index
    %172 = memref.load %arg2[%171, %c26] : memref<3x86xf32, #tpu.memory_space<smem>>
    %c4_72 = arith.constant 4 : index
    %c0_73 = arith.constant 0 : index
    %173 = vector.load %arg5[%c4_72, %c0_73] : memref<24x128xf32, #tpu.memory_space<vmem>>, vector<16x128xf32>
    %174 = vector.broadcast %172 : f32 to vector<16x128xf32>
    %175 = arith.mulf %174, %173 : vector<16x128xf32>
    %176 = arith.addf %170, %175 : vector<16x128xf32>
    %177 = arith.index_cast %arg0 : i32 to index
    %c31 = arith.constant 31 : index
    %178 = memref.load %arg2[%177, %c31] : memref<3x86xf32, #tpu.memory_space<smem>>
    %c5_74 = arith.constant 5 : index
    %c0_75 = arith.constant 0 : index
    %179 = vector.load %arg5[%c5_74, %c0_75] : memref<24x128xf32, #tpu.memory_space<vmem>>, vector<16x128xf32>
    %180 = vector.broadcast %178 : f32 to vector<16x128xf32>
    %181 = arith.mulf %180, %179 : vector<16x128xf32>
    %182 = arith.addf %176, %181 : vector<16x128xf32>
    %183 = arith.addf %122, %182 : vector<16x128xf32>
    %184 = arith.index_cast %arg0 : i32 to index
    %c12 = arith.constant 12 : index
    %185 = memref.load %arg2[%184, %c12] : memref<3x86xf32, #tpu.memory_space<smem>>
    %c1_76 = arith.constant 1 : index
    %c0_77 = arith.constant 0 : index
    %186 = vector.load %arg5[%c1_76, %c0_77] : memref<24x128xf32, #tpu.memory_space<vmem>>, vector<16x128xf32>
    %187 = vector.broadcast %185 : f32 to vector<16x128xf32>
    %188 = arith.mulf %187, %186 : vector<16x128xf32>
    %189 = arith.index_cast %arg0 : i32 to index
    %c17 = arith.constant 17 : index
    %190 = memref.load %arg2[%189, %c17] : memref<3x86xf32, #tpu.memory_space<smem>>
    %c2_78 = arith.constant 2 : index
    %c0_79 = arith.constant 0 : index
    %191 = vector.load %arg5[%c2_78, %c0_79] : memref<24x128xf32, #tpu.memory_space<vmem>>, vector<16x128xf32>
    %192 = vector.broadcast %190 : f32 to vector<16x128xf32>
    %193 = arith.mulf %192, %191 : vector<16x128xf32>
    %194 = arith.addf %188, %193 : vector<16x128xf32>
    %195 = arith.index_cast %arg0 : i32 to index
    %c22 = arith.constant 22 : index
    %196 = memref.load %arg2[%195, %c22] : memref<3x86xf32, #tpu.memory_space<smem>>
    %c3_80 = arith.constant 3 : index
    %c0_81 = arith.constant 0 : index
    %197 = vector.load %arg5[%c3_80, %c0_81] : memref<24x128xf32, #tpu.memory_space<vmem>>, vector<16x128xf32>
    %198 = vector.broadcast %196 : f32 to vector<16x128xf32>
    %199 = arith.mulf %198, %197 : vector<16x128xf32>
    %200 = arith.addf %194, %199 : vector<16x128xf32>
    %201 = arith.index_cast %arg0 : i32 to index
    %c27 = arith.constant 27 : index
    %202 = memref.load %arg2[%201, %c27] : memref<3x86xf32, #tpu.memory_space<smem>>
    %c4_82 = arith.constant 4 : index
    %c0_83 = arith.constant 0 : index
    %203 = vector.load %arg5[%c4_82, %c0_83] : memref<24x128xf32, #tpu.memory_space<vmem>>, vector<16x128xf32>
    %204 = vector.broadcast %202 : f32 to vector<16x128xf32>
    %205 = arith.mulf %204, %203 : vector<16x128xf32>
    %206 = arith.addf %200, %205 : vector<16x128xf32>
    %207 = arith.index_cast %arg0 : i32 to index
    %c32 = arith.constant 32 : index
    %208 = memref.load %arg2[%207, %c32] : memref<3x86xf32, #tpu.memory_space<smem>>
    %c5_84 = arith.constant 5 : index
    %c0_85 = arith.constant 0 : index
    %209 = vector.load %arg5[%c5_84, %c0_85] : memref<24x128xf32, #tpu.memory_space<vmem>>, vector<16x128xf32>
    %210 = vector.broadcast %208 : f32 to vector<16x128xf32>
    %211 = arith.mulf %210, %209 : vector<16x128xf32>
    %212 = arith.addf %206, %211 : vector<16x128xf32>
    %c127_i32_86 = arith.constant 127 : i32
    %213 = tpu.dynamic_rotate %212 by %c127_i32_86 dim 1 : vector<16x128xf32>, i32 -> vector<16x128xf32>
    %214 = arith.addf %153, %213 : vector<16x128xf32>
    %215 = arith.index_cast %arg0 : i32 to index
    %c13 = arith.constant 13 : index
    %216 = memref.load %arg2[%215, %c13] : memref<3x86xf32, #tpu.memory_space<smem>>
    %c1_87 = arith.constant 1 : index
    %c0_88 = arith.constant 0 : index
    %217 = vector.load %arg5[%c1_87, %c0_88] : memref<24x128xf32, #tpu.memory_space<vmem>>, vector<16x128xf32>
    %218 = vector.broadcast %216 : f32 to vector<16x128xf32>
    %219 = arith.mulf %218, %217 : vector<16x128xf32>
    %220 = arith.index_cast %arg0 : i32 to index
    %c18 = arith.constant 18 : index
    %221 = memref.load %arg2[%220, %c18] : memref<3x86xf32, #tpu.memory_space<smem>>
    %c2_89 = arith.constant 2 : index
    %c0_90 = arith.constant 0 : index
    %222 = vector.load %arg5[%c2_89, %c0_90] : memref<24x128xf32, #tpu.memory_space<vmem>>, vector<16x128xf32>
    %223 = vector.broadcast %221 : f32 to vector<16x128xf32>
    %224 = arith.mulf %223, %222 : vector<16x128xf32>
    %225 = arith.addf %219, %224 : vector<16x128xf32>
    %226 = arith.index_cast %arg0 : i32 to index
    %c23 = arith.constant 23 : index
    %227 = memref.load %arg2[%226, %c23] : memref<3x86xf32, #tpu.memory_space<smem>>
    %c3_91 = arith.constant 3 : index
    %c0_92 = arith.constant 0 : index
    %228 = vector.load %arg5[%c3_91, %c0_92] : memref<24x128xf32, #tpu.memory_space<vmem>>, vector<16x128xf32>
    %229 = vector.broadcast %227 : f32 to vector<16x128xf32>
    %230 = arith.mulf %229, %228 : vector<16x128xf32>
    %231 = arith.addf %225, %230 : vector<16x128xf32>
    %232 = arith.index_cast %arg0 : i32 to index
    %c28 = arith.constant 28 : index
    %233 = memref.load %arg2[%232, %c28] : memref<3x86xf32, #tpu.memory_space<smem>>
    %c4_93 = arith.constant 4 : index
    %c0_94 = arith.constant 0 : index
    %234 = vector.load %arg5[%c4_93, %c0_94] : memref<24x128xf32, #tpu.memory_space<vmem>>, vector<16x128xf32>
    %235 = vector.broadcast %233 : f32 to vector<16x128xf32>
    %236 = arith.mulf %235, %234 : vector<16x128xf32>
    %237 = arith.addf %231, %236 : vector<16x128xf32>
    %238 = arith.index_cast %arg0 : i32 to index
    %c33 = arith.constant 33 : index
    %239 = memref.load %arg2[%238, %c33] : memref<3x86xf32, #tpu.memory_space<smem>>
    %c5_95 = arith.constant 5 : index
    %c0_96 = arith.constant 0 : index
    %240 = vector.load %arg5[%c5_95, %c0_96] : memref<24x128xf32, #tpu.memory_space<vmem>>, vector<16x128xf32>
    %241 = vector.broadcast %239 : f32 to vector<16x128xf32>
    %242 = arith.mulf %241, %240 : vector<16x128xf32>
    %243 = arith.addf %237, %242 : vector<16x128xf32>
    %c126_i32 = arith.constant 126 : i32
    %244 = tpu.dynamic_rotate %243 by %c126_i32 dim 1 : vector<16x128xf32>, i32 -> vector<16x128xf32>
    %245 = arith.addf %183, %244 : vector<16x128xf32>
    %246 = arith.addf %245, %214 : vector<16x128xf32>
    %247 = arith.index_cast %arg0 : i32 to index
    %c84 = arith.constant 84 : index
    %248 = memref.load %arg2[%247, %c84] : memref<3x86xf32, #tpu.memory_space<smem>>
    %249 = vector.broadcast %248 : f32 to vector<16x128xf32>
    %250 = arith.addf %246, %249 : vector<16x128xf32>
    %cst_97 = arith.constant 0.000000e+00 : f32
    %251 = vector.broadcast %cst_97 : f32 to vector<16x128xf32>
    %252 = arith.cmpf ogt, %250, %251 : vector<16x128xf32>
    %cst_98 = arith.constant 0.00999999977 : f32
    %253 = vector.broadcast %cst_98 : f32 to vector<16x128xf32>
    %254 = arith.mulf %253, %250 : vector<16x128xf32>
    %255 = arith.select %252, %250, %254 : vector<16x128xi1>, vector<16x128xf32>
    %cst_99 = arith.constant 0.000000e+00 : f32
    %256 = vector.broadcast %cst_99 : f32 to vector<16x128xf32>
    %257 = arith.select %9, %255, %256 : vector<16x128xi1>, vector<16x128xf32>
    %c3_100 = arith.constant 3 : index
    %c0_101 = arith.constant 0 : index
    %258 = vector.load %arg5[%c3_100, %c0_101] : memref<24x128xf32, #tpu.memory_space<vmem>>, vector<16x128xf32>
    tpu.vector_store %arg5[%c3_100, %c0_101], %257 {strides = array<i32>} : memref<24x128xf32, #tpu.memory_space<vmem>>, vector<16x128xf32>,
    %cst_102 = arith.constant 0.000000e+00 : f32
    %259 = vector.broadcast %cst_102 : f32 to vector<16x128xf32>
    %cst_103 = arith.constant 0.000000e+00 : f32
    %260 = vector.broadcast %cst_103 : f32 to vector<16x128xf32>
    %261 = arith.index_cast %arg0 : i32 to index
    %c34 = arith.constant 34 : index
    %262 = memref.load %arg2[%261, %c34] : memref<3x86xf32, #tpu.memory_space<smem>>
    %c0_104 = arith.constant 0 : index
    %c0_105 = arith.constant 0 : index
    %263 = vector.load %arg5[%c0_104, %c0_105] : memref<24x128xf32, #tpu.memory_space<vmem>>, vector<16x128xf32>
    %264 = vector.broadcast %262 : f32 to vector<16x128xf32>
    %265 = arith.mulf %264, %263 : vector<16x128xf32>
    %266 = arith.index_cast %arg0 : i32 to index
    %c41 = arith.constant 41 : index
    %267 = memref.load %arg2[%266, %c41] : memref<3x86xf32, #tpu.memory_space<smem>>
    %c1_106 = arith.constant 1 : index
    %c0_107 = arith.constant 0 : index
    %268 = vector.load %arg5[%c1_106, %c0_107] : memref<24x128xf32, #tpu.memory_space<vmem>>, vector<16x128xf32>
    %269 = vector.broadcast %267 : f32 to vector<16x128xf32>
    %270 = arith.mulf %269, %268 : vector<16x128xf32>
    %271 = arith.addf %265, %270 : vector<16x128xf32>
    %272 = arith.index_cast %arg0 : i32 to index
    %c48 = arith.constant 48 : index
    %273 = memref.load %arg2[%272, %c48] : memref<3x86xf32, #tpu.memory_space<smem>>
    %c2_108 = arith.constant 2 : index
    %c0_109 = arith.constant 0 : index
    %274 = vector.load %arg5[%c2_108, %c0_109] : memref<24x128xf32, #tpu.memory_space<vmem>>, vector<16x128xf32>
    %275 = vector.broadcast %273 : f32 to vector<16x128xf32>
    %276 = arith.mulf %275, %274 : vector<16x128xf32>
    %277 = arith.addf %271, %276 : vector<16x128xf32>
    %278 = arith.index_cast %arg0 : i32 to index
    %c55 = arith.constant 55 : index
    %279 = memref.load %arg2[%278, %c55] : memref<3x86xf32, #tpu.memory_space<smem>>
    %c3_110 = arith.constant 3 : index
    %c0_111 = arith.constant 0 : index
    %280 = vector.load %arg5[%c3_110, %c0_111] : memref<24x128xf32, #tpu.memory_space<vmem>>, vector<16x128xf32>
    %281 = vector.broadcast %279 : f32 to vector<16x128xf32>
    %282 = arith.mulf %281, %280 : vector<16x128xf32>
    %283 = arith.addf %277, %282 : vector<16x128xf32>
    %284 = arith.index_cast %arg0 : i32 to index
    %c62 = arith.constant 62 : index
    %285 = memref.load %arg2[%284, %c62] : memref<3x86xf32, #tpu.memory_space<smem>>
    %c4_112 = arith.constant 4 : index
    %c0_113 = arith.constant 0 : index
    %286 = vector.load %arg5[%c4_112, %c0_113] : memref<24x128xf32, #tpu.memory_space<vmem>>, vector<16x128xf32>
    %287 = vector.broadcast %285 : f32 to vector<16x128xf32>
    %288 = arith.mulf %287, %286 : vector<16x128xf32>
    %289 = arith.addf %283, %288 : vector<16x128xf32>
    %290 = arith.index_cast %arg0 : i32 to index
    %c69 = arith.constant 69 : index
    %291 = memref.load %arg2[%290, %c69] : memref<3x86xf32, #tpu.memory_space<smem>>
    %c5_114 = arith.constant 5 : index
    %c0_115 = arith.constant 0 : index
    %292 = vector.load %arg5[%c5_114, %c0_115] : memref<24x128xf32, #tpu.memory_space<vmem>>, vector<16x128xf32>
    %293 = vector.broadcast %291 : f32 to vector<16x128xf32>
    %294 = arith.mulf %293, %292 : vector<16x128xf32>
    %295 = arith.addf %289, %294 : vector<16x128xf32>
    %296 = arith.index_cast %arg0 : i32 to index
    %c76 = arith.constant 76 : index
    %297 = memref.load %arg2[%296, %c76] : memref<3x86xf32, #tpu.memory_space<smem>>
    %c6_116 = arith.constant 6 : index
    %c0_117 = arith.constant 0 : index
    %298 = vector.load %arg5[%c6_116, %c0_117] : memref<24x128xf32, #tpu.memory_space<vmem>>, vector<16x128xf32>
    %299 = vector.broadcast %297 : f32 to vector<16x128xf32>
    %300 = arith.mulf %299, %298 : vector<16x128xf32>
    %301 = arith.addf %295, %300 : vector<16x128xf32>
    %c3_i32 = arith.constant 3 : i32
    %302 = tpu.dynamic_rotate %301 by %c3_i32 dim 1 : vector<16x128xf32>, i32 -> vector<16x128xf32>
    %303 = arith.addf %259, %302 : vector<16x128xf32>
    %304 = arith.index_cast %arg0 : i32 to index
    %c35 = arith.constant 35 : index
    %305 = memref.load %arg2[%304, %c35] : memref<3x86xf32, #tpu.memory_space<smem>>
    %c0_118 = arith.constant 0 : index
    %c0_119 = arith.constant 0 : index
    %306 = vector.load %arg5[%c0_118, %c0_119] : memref<24x128xf32, #tpu.memory_space<vmem>>, vector<16x128xf32>
    %307 = vector.broadcast %305 : f32 to vector<16x128xf32>
    %308 = arith.mulf %307, %306 : vector<16x128xf32>
    %309 = arith.index_cast %arg0 : i32 to index
    %c42 = arith.constant 42 : index
    %310 = memref.load %arg2[%309, %c42] : memref<3x86xf32, #tpu.memory_space<smem>>
    %c1_120 = arith.constant 1 : index
    %c0_121 = arith.constant 0 : index
    %311 = vector.load %arg5[%c1_120, %c0_121] : memref<24x128xf32, #tpu.memory_space<vmem>>, vector<16x128xf32>
    %312 = vector.broadcast %310 : f32 to vector<16x128xf32>
    %313 = arith.mulf %312, %311 : vector<16x128xf32>
    %314 = arith.addf %308, %313 : vector<16x128xf32>
    %315 = arith.index_cast %arg0 : i32 to index
    %c49 = arith.constant 49 : index
    %316 = memref.load %arg2[%315, %c49] : memref<3x86xf32, #tpu.memory_space<smem>>
    %c2_122 = arith.constant 2 : index
    %c0_123 = arith.constant 0 : index
    %317 = vector.load %arg5[%c2_122, %c0_123] : memref<24x128xf32, #tpu.memory_space<vmem>>, vector<16x128xf32>
    %318 = vector.broadcast %316 : f32 to vector<16x128xf32>
    %319 = arith.mulf %318, %317 : vector<16x128xf32>
    %320 = arith.addf %314, %319 : vector<16x128xf32>
    %321 = arith.index_cast %arg0 : i32 to index
    %c56 = arith.constant 56 : index
    %322 = memref.load %arg2[%321, %c56] : memref<3x86xf32, #tpu.memory_space<smem>>
    %c3_124 = arith.constant 3 : index
    %c0_125 = arith.constant 0 : index
    %323 = vector.load %arg5[%c3_124, %c0_125] : memref<24x128xf32, #tpu.memory_space<vmem>>, vector<16x128xf32>
    %324 = vector.broadcast %322 : f32 to vector<16x128xf32>
    %325 = arith.mulf %324, %323 : vector<16x128xf32>
    %326 = arith.addf %320, %325 : vector<16x128xf32>
    %327 = arith.index_cast %arg0 : i32 to index
    %c63 = arith.constant 63 : index
    %328 = memref.load %arg2[%327, %c63] : memref<3x86xf32, #tpu.memory_space<smem>>
    %c4_126 = arith.constant 4 : index
    %c0_127 = arith.constant 0 : index
    %329 = vector.load %arg5[%c4_126, %c0_127] : memref<24x128xf32, #tpu.memory_space<vmem>>, vector<16x128xf32>
    %330 = vector.broadcast %328 : f32 to vector<16x128xf32>
    %331 = arith.mulf %330, %329 : vector<16x128xf32>
    %332 = arith.addf %326, %331 : vector<16x128xf32>
    %333 = arith.index_cast %arg0 : i32 to index
    %c70 = arith.constant 70 : index
    %334 = memref.load %arg2[%333, %c70] : memref<3x86xf32, #tpu.memory_space<smem>>
    %c5_128 = arith.constant 5 : index
    %c0_129 = arith.constant 0 : index
    %335 = vector.load %arg5[%c5_128, %c0_129] : memref<24x128xf32, #tpu.memory_space<vmem>>, vector<16x128xf32>
    %336 = vector.broadcast %334 : f32 to vector<16x128xf32>
    %337 = arith.mulf %336, %335 : vector<16x128xf32>
    %338 = arith.addf %332, %337 : vector<16x128xf32>
    %339 = arith.index_cast %arg0 : i32 to index
    %c77 = arith.constant 77 : index
    %340 = memref.load %arg2[%339, %c77] : memref<3x86xf32, #tpu.memory_space<smem>>
    %c6_130 = arith.constant 6 : index
    %c0_131 = arith.constant 0 : index
    %341 = vector.load %arg5[%c6_130, %c0_131] : memref<24x128xf32, #tpu.memory_space<vmem>>, vector<16x128xf32>
    %342 = vector.broadcast %340 : f32 to vector<16x128xf32>
    %343 = arith.mulf %342, %341 : vector<16x128xf32>
    %344 = arith.addf %338, %343 : vector<16x128xf32>
    %c2_i32_132 = arith.constant 2 : i32
    %345 = tpu.dynamic_rotate %344 by %c2_i32_132 dim 1 : vector<16x128xf32>, i32 -> vector<16x128xf32>
    %346 = arith.addf %260, %345 : vector<16x128xf32>
    %347 = arith.index_cast %arg0 : i32 to index
    %c36 = arith.constant 36 : index
    %348 = memref.load %arg2[%347, %c36] : memref<3x86xf32, #tpu.memory_space<smem>>
    %c0_133 = arith.constant 0 : index
    %c0_134 = arith.constant 0 : index
    %349 = vector.load %arg5[%c0_133, %c0_134] : memref<24x128xf32, #tpu.memory_space<vmem>>, vector<16x128xf32>
    %350 = vector.broadcast %348 : f32 to vector<16x128xf32>
    %351 = arith.mulf %350, %349 : vector<16x128xf32>
    %352 = arith.index_cast %arg0 : i32 to index
    %c43 = arith.constant 43 : index
    %353 = memref.load %arg2[%352, %c43] : memref<3x86xf32, #tpu.memory_space<smem>>
    %c1_135 = arith.constant 1 : index
    %c0_136 = arith.constant 0 : index
    %354 = vector.load %arg5[%c1_135, %c0_136] : memref<24x128xf32, #tpu.memory_space<vmem>>, vector<16x128xf32>
    %355 = vector.broadcast %353 : f32 to vector<16x128xf32>
    %356 = arith.mulf %355, %354 : vector<16x128xf32>
    %357 = arith.addf %351, %356 : vector<16x128xf32>
    %358 = arith.index_cast %arg0 : i32 to index
    %c50 = arith.constant 50 : index
    %359 = memref.load %arg2[%358, %c50] : memref<3x86xf32, #tpu.memory_space<smem>>
    %c2_137 = arith.constant 2 : index
    %c0_138 = arith.constant 0 : index
    %360 = vector.load %arg5[%c2_137, %c0_138] : memref<24x128xf32, #tpu.memory_space<vmem>>, vector<16x128xf32>
    %361 = vector.broadcast %359 : f32 to vector<16x128xf32>
    %362 = arith.mulf %361, %360 : vector<16x128xf32>
    %363 = arith.addf %357, %362 : vector<16x128xf32>
    %364 = arith.index_cast %arg0 : i32 to index
    %c57 = arith.constant 57 : index
    %365 = memref.load %arg2[%364, %c57] : memref<3x86xf32, #tpu.memory_space<smem>>
    %c3_139 = arith.constant 3 : index
    %c0_140 = arith.constant 0 : index
    %366 = vector.load %arg5[%c3_139, %c0_140] : memref<24x128xf32, #tpu.memory_space<vmem>>, vector<16x128xf32>
    %367 = vector.broadcast %365 : f32 to vector<16x128xf32>
    %368 = arith.mulf %367, %366 : vector<16x128xf32>
    %369 = arith.addf %363, %368 : vector<16x128xf32>
    %370 = arith.index_cast %arg0 : i32 to index
    %c64 = arith.constant 64 : index
    %371 = memref.load %arg2[%370, %c64] : memref<3x86xf32, #tpu.memory_space<smem>>
    %c4_141 = arith.constant 4 : index
    %c0_142 = arith.constant 0 : index
    %372 = vector.load %arg5[%c4_141, %c0_142] : memref<24x128xf32, #tpu.memory_space<vmem>>, vector<16x128xf32>
    %373 = vector.broadcast %371 : f32 to vector<16x128xf32>
    %374 = arith.mulf %373, %372 : vector<16x128xf32>
    %375 = arith.addf %369, %374 : vector<16x128xf32>
    %376 = arith.index_cast %arg0 : i32 to index
    %c71 = arith.constant 71 : index
    %377 = memref.load %arg2[%376, %c71] : memref<3x86xf32, #tpu.memory_space<smem>>
    %c5_143 = arith.constant 5 : index
    %c0_144 = arith.constant 0 : index
    %378 = vector.load %arg5[%c5_143, %c0_144] : memref<24x128xf32, #tpu.memory_space<vmem>>, vector<16x128xf32>
    %379 = vector.broadcast %377 : f32 to vector<16x128xf32>
    %380 = arith.mulf %379, %378 : vector<16x128xf32>
    %381 = arith.addf %375, %380 : vector<16x128xf32>
    %382 = arith.index_cast %arg0 : i32 to index
    %c78 = arith.constant 78 : index
    %383 = memref.load %arg2[%382, %c78] : memref<3x86xf32, #tpu.memory_space<smem>>
    %c6_145 = arith.constant 6 : index
    %c0_146 = arith.constant 0 : index
    %384 = vector.load %arg5[%c6_145, %c0_146] : memref<24x128xf32, #tpu.memory_space<vmem>>, vector<16x128xf32>
    %385 = vector.broadcast %383 : f32 to vector<16x128xf32>
    %386 = arith.mulf %385, %384 : vector<16x128xf32>
    %387 = arith.addf %381, %386 : vector<16x128xf32>
    %c1_i32_147 = arith.constant 1 : i32
    %388 = tpu.dynamic_rotate %387 by %c1_i32_147 dim 1 : vector<16x128xf32>, i32 -> vector<16x128xf32>
    %389 = arith.addf %303, %388 : vector<16x128xf32>
    %390 = arith.index_cast %arg0 : i32 to index
    %c37 = arith.constant 37 : index
    %391 = memref.load %arg2[%390, %c37] : memref<3x86xf32, #tpu.memory_space<smem>>
    %c0_148 = arith.constant 0 : index
    %c0_149 = arith.constant 0 : index
    %392 = vector.load %arg5[%c0_148, %c0_149] : memref<24x128xf32, #tpu.memory_space<vmem>>, vector<16x128xf32>
    %393 = vector.broadcast %391 : f32 to vector<16x128xf32>
    %394 = arith.mulf %393, %392 : vector<16x128xf32>
    %395 = arith.index_cast %arg0 : i32 to index
    %c44 = arith.constant 44 : index
    %396 = memref.load %arg2[%395, %c44] : memref<3x86xf32, #tpu.memory_space<smem>>
    %c1_150 = arith.constant 1 : index
    %c0_151 = arith.constant 0 : index
    %397 = vector.load %arg5[%c1_150, %c0_151] : memref<24x128xf32, #tpu.memory_space<vmem>>, vector<16x128xf32>
    %398 = vector.broadcast %396 : f32 to vector<16x128xf32>
    %399 = arith.mulf %398, %397 : vector<16x128xf32>
    %400 = arith.addf %394, %399 : vector<16x128xf32>
    %401 = arith.index_cast %arg0 : i32 to index
    %c51 = arith.constant 51 : index
    %402 = memref.load %arg2[%401, %c51] : memref<3x86xf32, #tpu.memory_space<smem>>
    %c2_152 = arith.constant 2 : index
    %c0_153 = arith.constant 0 : index
    %403 = vector.load %arg5[%c2_152, %c0_153] : memref<24x128xf32, #tpu.memory_space<vmem>>, vector<16x128xf32>
    %404 = vector.broadcast %402 : f32 to vector<16x128xf32>
    %405 = arith.mulf %404, %403 : vector<16x128xf32>
    %406 = arith.addf %400, %405 : vector<16x128xf32>
    %407 = arith.index_cast %arg0 : i32 to index
    %c58 = arith.constant 58 : index
    %408 = memref.load %arg2[%407, %c58] : memref<3x86xf32, #tpu.memory_space<smem>>
    %c3_154 = arith.constant 3 : index
    %c0_155 = arith.constant 0 : index
    %409 = vector.load %arg5[%c3_154, %c0_155] : memref<24x128xf32, #tpu.memory_space<vmem>>, vector<16x128xf32>
    %410 = vector.broadcast %408 : f32 to vector<16x128xf32>
    %411 = arith.mulf %410, %409 : vector<16x128xf32>
    %412 = arith.addf %406, %411 : vector<16x128xf32>
    %413 = arith.index_cast %arg0 : i32 to index
    %c65 = arith.constant 65 : index
    %414 = memref.load %arg2[%413, %c65] : memref<3x86xf32, #tpu.memory_space<smem>>
    %c4_156 = arith.constant 4 : index
    %c0_157 = arith.constant 0 : index
    %415 = vector.load %arg5[%c4_156, %c0_157] : memref<24x128xf32, #tpu.memory_space<vmem>>, vector<16x128xf32>
    %416 = vector.broadcast %414 : f32 to vector<16x128xf32>
    %417 = arith.mulf %416, %415 : vector<16x128xf32>
    %418 = arith.addf %412, %417 : vector<16x128xf32>
    %419 = arith.index_cast %arg0 : i32 to index
    %c72 = arith.constant 72 : index
    %420 = memref.load %arg2[%419, %c72] : memref<3x86xf32, #tpu.memory_space<smem>>
    %c5_158 = arith.constant 5 : index
    %c0_159 = arith.constant 0 : index
    %421 = vector.load %arg5[%c5_158, %c0_159] : memref<24x128xf32, #tpu.memory_space<vmem>>, vector<16x128xf32>
    %422 = vector.broadcast %420 : f32 to vector<16x128xf32>
    %423 = arith.mulf %422, %421 : vector<16x128xf32>
    %424 = arith.addf %418, %423 : vector<16x128xf32>
    %425 = arith.index_cast %arg0 : i32 to index
    %c79 = arith.constant 79 : index
    %426 = memref.load %arg2[%425, %c79] : memref<3x86xf32, #tpu.memory_space<smem>>
    %c6_160 = arith.constant 6 : index
    %c0_161 = arith.constant 0 : index
    %427 = vector.load %arg5[%c6_160, %c0_161] : memref<24x128xf32, #tpu.memory_space<vmem>>, vector<16x128xf32>
    %428 = vector.broadcast %426 : f32 to vector<16x128xf32>
    %429 = arith.mulf %428, %427 : vector<16x128xf32>
    %430 = arith.addf %424, %429 : vector<16x128xf32>
    %431 = arith.addf %346, %430 : vector<16x128xf32>
    %432 = arith.index_cast %arg0 : i32 to index
    %c38 = arith.constant 38 : index
    %433 = memref.load %arg2[%432, %c38] : memref<3x86xf32, #tpu.memory_space<smem>>
    %c0_162 = arith.constant 0 : index
    %c0_163 = arith.constant 0 : index
    %434 = vector.load %arg5[%c0_162, %c0_163] : memref<24x128xf32, #tpu.memory_space<vmem>>, vector<16x128xf32>
    %435 = vector.broadcast %433 : f32 to vector<16x128xf32>
    %436 = arith.mulf %435, %434 : vector<16x128xf32>
    %437 = arith.index_cast %arg0 : i32 to index
    %c45 = arith.constant 45 : index
    %438 = memref.load %arg2[%437, %c45] : memref<3x86xf32, #tpu.memory_space<smem>>
    %c1_164 = arith.constant 1 : index
    %c0_165 = arith.constant 0 : index
    %439 = vector.load %arg5[%c1_164, %c0_165] : memref<24x128xf32, #tpu.memory_space<vmem>>, vector<16x128xf32>
    %440 = vector.broadcast %438 : f32 to vector<16x128xf32>
    %441 = arith.mulf %440, %439 : vector<16x128xf32>
    %442 = arith.addf %436, %441 : vector<16x128xf32>
    %443 = arith.index_cast %arg0 : i32 to index
    %c52 = arith.constant 52 : index
    %444 = memref.load %arg2[%443, %c52] : memref<3x86xf32, #tpu.memory_space<smem>>
    %c2_166 = arith.constant 2 : index
    %c0_167 = arith.constant 0 : index
    %445 = vector.load %arg5[%c2_166, %c0_167] : memref<24x128xf32, #tpu.memory_space<vmem>>, vector<16x128xf32>
    %446 = vector.broadcast %444 : f32 to vector<16x128xf32>
    %447 = arith.mulf %446, %445 : vector<16x128xf32>
    %448 = arith.addf %442, %447 : vector<16x128xf32>
    %449 = arith.index_cast %arg0 : i32 to index
    %c59 = arith.constant 59 : index
    %450 = memref.load %arg2[%449, %c59] : memref<3x86xf32, #tpu.memory_space<smem>>
    %c3_168 = arith.constant 3 : index
    %c0_169 = arith.constant 0 : index
    %451 = vector.load %arg5[%c3_168, %c0_169] : memref<24x128xf32, #tpu.memory_space<vmem>>, vector<16x128xf32>
    %452 = vector.broadcast %450 : f32 to vector<16x128xf32>
    %453 = arith.mulf %452, %451 : vector<16x128xf32>
    %454 = arith.addf %448, %453 : vector<16x128xf32>
    %455 = arith.index_cast %arg0 : i32 to index
    %c66 = arith.constant 66 : index
    %456 = memref.load %arg2[%455, %c66] : memref<3x86xf32, #tpu.memory_space<smem>>
    %c4_170 = arith.constant 4 : index
    %c0_171 = arith.constant 0 : index
    %457 = vector.load %arg5[%c4_170, %c0_171] : memref<24x128xf32, #tpu.memory_space<vmem>>, vector<16x128xf32>
    %458 = vector.broadcast %456 : f32 to vector<16x128xf32>
    %459 = arith.mulf %458, %457 : vector<16x128xf32>
    %460 = arith.addf %454, %459 : vector<16x128xf32>
    %461 = arith.index_cast %arg0 : i32 to index
    %c73 = arith.constant 73 : index
    %462 = memref.load %arg2[%461, %c73] : memref<3x86xf32, #tpu.memory_space<smem>>
    %c5_172 = arith.constant 5 : index
    %c0_173 = arith.constant 0 : index
    %463 = vector.load %arg5[%c5_172, %c0_173] : memref<24x128xf32, #tpu.memory_space<vmem>>, vector<16x128xf32>
    %464 = vector.broadcast %462 : f32 to vector<16x128xf32>
    %465 = arith.mulf %464, %463 : vector<16x128xf32>
    %466 = arith.addf %460, %465 : vector<16x128xf32>
    %467 = arith.index_cast %arg0 : i32 to index
    %c80 = arith.constant 80 : index
    %468 = memref.load %arg2[%467, %c80] : memref<3x86xf32, #tpu.memory_space<smem>>
    %c6_174 = arith.constant 6 : index
    %c0_175 = arith.constant 0 : index
    %469 = vector.load %arg5[%c6_174, %c0_175] : memref<24x128xf32, #tpu.memory_space<vmem>>, vector<16x128xf32>
    %470 = vector.broadcast %468 : f32 to vector<16x128xf32>
    %471 = arith.mulf %470, %469 : vector<16x128xf32>
    %472 = arith.addf %466, %471 : vector<16x128xf32>
    %c127_i32_176 = arith.constant 127 : i32
    %473 = tpu.dynamic_rotate %472 by %c127_i32_176 dim 1 : vector<16x128xf32>, i32 -> vector<16x128xf32>
    %474 = arith.addf %389, %473 : vector<16x128xf32>
    %475 = arith.index_cast %arg0 : i32 to index
    %c39 = arith.constant 39 : index
    %476 = memref.load %arg2[%475, %c39] : memref<3x86xf32, #tpu.memory_space<smem>>
    %c0_177 = arith.constant 0 : index
    %c0_178 = arith.constant 0 : index
    %477 = vector.load %arg5[%c0_177, %c0_178] : memref<24x128xf32, #tpu.memory_space<vmem>>, vector<16x128xf32>
    %478 = vector.broadcast %476 : f32 to vector<16x128xf32>
    %479 = arith.mulf %478, %477 : vector<16x128xf32>
    %480 = arith.index_cast %arg0 : i32 to index
    %c46 = arith.constant 46 : index
    %481 = memref.load %arg2[%480, %c46] : memref<3x86xf32, #tpu.memory_space<smem>>
    %c1_179 = arith.constant 1 : index
    %c0_180 = arith.constant 0 : index
    %482 = vector.load %arg5[%c1_179, %c0_180] : memref<24x128xf32, #tpu.memory_space<vmem>>, vector<16x128xf32>
    %483 = vector.broadcast %481 : f32 to vector<16x128xf32>
    %484 = arith.mulf %483, %482 : vector<16x128xf32>
    %485 = arith.addf %479, %484 : vector<16x128xf32>
    %486 = arith.index_cast %arg0 : i32 to index
    %c53 = arith.constant 53 : index
    %487 = memref.load %arg2[%486, %c53] : memref<3x86xf32, #tpu.memory_space<smem>>
    %c2_181 = arith.constant 2 : index
    %c0_182 = arith.constant 0 : index
    %488 = vector.load %arg5[%c2_181, %c0_182] : memref<24x128xf32, #tpu.memory_space<vmem>>, vector<16x128xf32>
    %489 = vector.broadcast %487 : f32 to vector<16x128xf32>
    %490 = arith.mulf %489, %488 : vector<16x128xf32>
    %491 = arith.addf %485, %490 : vector<16x128xf32>
    %492 = arith.index_cast %arg0 : i32 to index
    %c60 = arith.constant 60 : index
    %493 = memref.load %arg2[%492, %c60] : memref<3x86xf32, #tpu.memory_space<smem>>
    %c3_183 = arith.constant 3 : index
    %c0_184 = arith.constant 0 : index
    %494 = vector.load %arg5[%c3_183, %c0_184] : memref<24x128xf32, #tpu.memory_space<vmem>>, vector<16x128xf32>
    %495 = vector.broadcast %493 : f32 to vector<16x128xf32>
    %496 = arith.mulf %495, %494 : vector<16x128xf32>
    %497 = arith.addf %491, %496 : vector<16x128xf32>
    %498 = arith.index_cast %arg0 : i32 to index
    %c67 = arith.constant 67 : index
    %499 = memref.load %arg2[%498, %c67] : memref<3x86xf32, #tpu.memory_space<smem>>
    %c4_185 = arith.constant 4 : index
    %c0_186 = arith.constant 0 : index
    %500 = vector.load %arg5[%c4_185, %c0_186] : memref<24x128xf32, #tpu.memory_space<vmem>>, vector<16x128xf32>
    %501 = vector.broadcast %499 : f32 to vector<16x128xf32>
    %502 = arith.mulf %501, %500 : vector<16x128xf32>
    %503 = arith.addf %497, %502 : vector<16x128xf32>
    %504 = arith.index_cast %arg0 : i32 to index
    %c74 = arith.constant 74 : index
    %505 = memref.load %arg2[%504, %c74] : memref<3x86xf32, #tpu.memory_space<smem>>
    %c5_187 = arith.constant 5 : index
    %c0_188 = arith.constant 0 : index
    %506 = vector.load %arg5[%c5_187, %c0_188] : memref<24x128xf32, #tpu.memory_space<vmem>>, vector<16x128xf32>
    %507 = vector.broadcast %505 : f32 to vector<16x128xf32>
    %508 = arith.mulf %507, %506 : vector<16x128xf32>
    %509 = arith.addf %503, %508 : vector<16x128xf32>
    %510 = arith.index_cast %arg0 : i32 to index
    %c81 = arith.constant 81 : index
    %511 = memref.load %arg2[%510, %c81] : memref<3x86xf32, #tpu.memory_space<smem>>
    %c6_189 = arith.constant 6 : index
    %c0_190 = arith.constant 0 : index
    %512 = vector.load %arg5[%c6_189, %c0_190] : memref<24x128xf32, #tpu.memory_space<vmem>>, vector<16x128xf32>
    %513 = vector.broadcast %511 : f32 to vector<16x128xf32>
    %514 = arith.mulf %513, %512 : vector<16x128xf32>
    %515 = arith.addf %509, %514 : vector<16x128xf32>
    %c126_i32_191 = arith.constant 126 : i32
    %516 = tpu.dynamic_rotate %515 by %c126_i32_191 dim 1 : vector<16x128xf32>, i32 -> vector<16x128xf32>
    %517 = arith.addf %431, %516 : vector<16x128xf32>
    %518 = arith.index_cast %arg0 : i32 to index
    %c40 = arith.constant 40 : index
    %519 = memref.load %arg2[%518, %c40] : memref<3x86xf32, #tpu.memory_space<smem>>
    %c0_192 = arith.constant 0 : index
    %c0_193 = arith.constant 0 : index
    %520 = vector.load %arg5[%c0_192, %c0_193] : memref<24x128xf32, #tpu.memory_space<vmem>>, vector<16x128xf32>
    %521 = vector.broadcast %519 : f32 to vector<16x128xf32>
    %522 = arith.mulf %521, %520 : vector<16x128xf32>
    %523 = arith.index_cast %arg0 : i32 to index
    %c47 = arith.constant 47 : index
    %524 = memref.load %arg2[%523, %c47] : memref<3x86xf32, #tpu.memory_space<smem>>
    %c1_194 = arith.constant 1 : index
    %c0_195 = arith.constant 0 : index
    %525 = vector.load %arg5[%c1_194, %c0_195] : memref<24x128xf32, #tpu.memory_space<vmem>>, vector<16x128xf32>
    %526 = vector.broadcast %524 : f32 to vector<16x128xf32>
    %527 = arith.mulf %526, %525 : vector<16x128xf32>
    %528 = arith.addf %522, %527 : vector<16x128xf32>
    %529 = arith.index_cast %arg0 : i32 to index
    %c54 = arith.constant 54 : index
    %530 = memref.load %arg2[%529, %c54] : memref<3x86xf32, #tpu.memory_space<smem>>
    %c2_196 = arith.constant 2 : index
    %c0_197 = arith.constant 0 : index
    %531 = vector.load %arg5[%c2_196, %c0_197] : memref<24x128xf32, #tpu.memory_space<vmem>>, vector<16x128xf32>
    %532 = vector.broadcast %530 : f32 to vector<16x128xf32>
    %533 = arith.mulf %532, %531 : vector<16x128xf32>
    %534 = arith.addf %528, %533 : vector<16x128xf32>
    %535 = arith.index_cast %arg0 : i32 to index
    %c61 = arith.constant 61 : index
    %536 = memref.load %arg2[%535, %c61] : memref<3x86xf32, #tpu.memory_space<smem>>
    %c3_198 = arith.constant 3 : index
    %c0_199 = arith.constant 0 : index
    %537 = vector.load %arg5[%c3_198, %c0_199] : memref<24x128xf32, #tpu.memory_space<vmem>>, vector<16x128xf32>
    %538 = vector.broadcast %536 : f32 to vector<16x128xf32>
    %539 = arith.mulf %538, %537 : vector<16x128xf32>
    %540 = arith.addf %534, %539 : vector<16x128xf32>
    %541 = arith.index_cast %arg0 : i32 to index
    %c68 = arith.constant 68 : index
    %542 = memref.load %arg2[%541, %c68] : memref<3x86xf32, #tpu.memory_space<smem>>
    %c4_200 = arith.constant 4 : index
    %c0_201 = arith.constant 0 : index
    %543 = vector.load %arg5[%c4_200, %c0_201] : memref<24x128xf32, #tpu.memory_space<vmem>>, vector<16x128xf32>
    %544 = vector.broadcast %542 : f32 to vector<16x128xf32>
    %545 = arith.mulf %544, %543 : vector<16x128xf32>
    %546 = arith.addf %540, %545 : vector<16x128xf32>
    %547 = arith.index_cast %arg0 : i32 to index
    %c75 = arith.constant 75 : index
    %548 = memref.load %arg2[%547, %c75] : memref<3x86xf32, #tpu.memory_space<smem>>
    %c5_202 = arith.constant 5 : index
    %c0_203 = arith.constant 0 : index
    %549 = vector.load %arg5[%c5_202, %c0_203] : memref<24x128xf32, #tpu.memory_space<vmem>>, vector<16x128xf32>
    %550 = vector.broadcast %548 : f32 to vector<16x128xf32>
    %551 = arith.mulf %550, %549 : vector<16x128xf32>
    %552 = arith.addf %546, %551 : vector<16x128xf32>
    %553 = arith.index_cast %arg0 : i32 to index
    %c82 = arith.constant 82 : index
    %554 = memref.load %arg2[%553, %c82] : memref<3x86xf32, #tpu.memory_space<smem>>
    %c6_204 = arith.constant 6 : index
    %c0_205 = arith.constant 0 : index
    %555 = vector.load %arg5[%c6_204, %c0_205] : memref<24x128xf32, #tpu.memory_space<vmem>>, vector<16x128xf32>
    %556 = vector.broadcast %554 : f32 to vector<16x128xf32>
    %557 = arith.mulf %556, %555 : vector<16x128xf32>
    %558 = arith.addf %552, %557 : vector<16x128xf32>
    %c125_i32 = arith.constant 125 : i32
    %559 = tpu.dynamic_rotate %558 by %c125_i32 dim 1 : vector<16x128xf32>, i32 -> vector<16x128xf32>
    %560 = arith.addf %474, %559 : vector<16x128xf32>
    %561 = arith.addf %560, %517 : vector<16x128xf32>
    %562 = arith.index_cast %arg0 : i32 to index
    %c85 = arith.constant 85 : index
    %563 = memref.load %arg2[%562, %c85] : memref<3x86xf32, #tpu.memory_space<smem>>
    %564 = vector.broadcast %563 : f32 to vector<16x128xf32>
    %565 = arith.addf %561, %564 : vector<16x128xf32>
    %c0_206 = arith.constant 0 : index
    %c3_207 = arith.constant 3 : index
    %c0_208 = arith.constant 0 : index
    %566 = vector.load %arg1[%c0_206, %c3_207, %c0_208] : memref<1x24x128xf32, #tpu.memory_space<vmem>>, vector<1x16x128xf32>
    %567 = vector.shape_cast %566 : vector<1x16x128xf32> to vector<16x128xf32>
    %568 = math.tanh %565 : vector<16x128xf32>
    %cst_209 = arith.constant 3.14159274 : f32
    %569 = vector.broadcast %cst_209 : f32 to vector<16x128xf32>
    %570 = arith.mulf %568, %569 : vector<16x128xf32>
    %571 = arith.addf %570, %567 : vector<16x128xf32>
    %c0_210 = arith.constant 0 : index
    %c0_211 = arith.constant 0 : index
    %c0_212 = arith.constant 0 : index
    %572 = vector.load %arg4[%c0_210, %c0_211, %c0_212] : memref<1x16x128xf32, #tpu.memory_space<vmem>>, vector<1x16x128xf32>
    %573 = vector.shape_cast %572 : vector<1x16x128xf32> to vector<16x128xf32>
    %574 = vector.shape_cast %571 : vector<16x128xf32> to vector<1x16x128xf32>
    tpu.vector_store %arg4[%c0_210, %c0_211, %c0_212], %574 {strides = array<i32>} : memref<1x16x128xf32, #tpu.memory_space<vmem>>, vector<1x16x128xf32>,
    return
  }
  func.func @transform_0(%arg0: i32) -> (i32, i32, i32) {
    %c0_i32 = arith.constant 0 : i32
    %c0_i32_0 = arith.constant 0 : i32
    %c0_i32_1 = arith.constant 0 : i32
    return %arg0, %c0_i32, %c0_i32_0 : i32, i32, i32
  }
  func.func @transform_1(%arg0: i32) -> (i32, i32) {
    %c0_i32 = arith.constant 0 : i32
    %c0_i32_0 = arith.constant 0 : i32
    %c0_i32_1 = arith.constant 0 : i32
    return %c0_i32, %c0_i32_0 : i32, i32
  }
  func.func @transform_2(%arg0: i32) -> (i32, i32, i32) {
    %c0_i32 = arith.constant 0 : i32
    %c0_i32_0 = arith.constant 0 : i32
    %c0_i32_1 = arith.constant 0 : i32
    %c0_i32_2 = arith.constant 0 : i32
    return %c0_i32, %c0_i32_0, %c0_i32_1 : i32, i32, i32
  }
  func.func @transform_3(%arg0: i32) -> (i32, i32, i32) {
    %c0_i32 = arith.constant 0 : i32
    %c0_i32_0 = arith.constant 0 : i32
    %c0_i32_1 = arith.constant 0 : i32
    return %arg0, %c0_i32, %c0_i32_0 : i32, i32, i32
  }
}

</mosaic_0001>

<llo_original>
// kernel: cnn_dpe_skip_forward.1
$region0: #{cnn_dpe_skip_forward.1}
  #allocation0 [shape = 'u32[]', space=smem, size = 0x4, offset = 0x4, fixed_abs, tag = 'smem constant byte address 0x4 - core index']
  #allocation1 [shape = 'u32[144,128]{1,0:T(1,128)}', space=vmem, size = 0x12000, scoped, tag = 'internal scratch']
  #allocation2 [shape = 'f32[24,128]{1,0:T(8,128)}', space=vmem, size = 0x3000, scoped, tag = 'scratch operand']
  %s0 = inlined_call_operand.vmem [shape: f32[3,24,128], index: 0, kind: input, shape index: {}]
  %s1 = inlined_call_operand.vmem [shape: f32[3,86], index: 1, kind: input, shape index: {}]
  %s2 = inlined_call_operand.vmem [shape: f32[1,1,128], index: 2, kind: input, shape index: {}]
  %s3 = inlined_call_operand.vmem [shape: f32[3,16,128], index: 3, kind: output, shape index: {}]
  %s4 = sld [smem:[#allocation0]]
  $region49: #{cnn_dpe_skip_forward.1} parent=0
    _
  %s6 = ssub.s32 1, %s4
  %s7 = scalar_select 0, %s6, %s4
  $region1: #{cnn_dpe_skip_forward.1} parent=0
    #allocation3 [shape = 'u8[2048]{0}', space=smem, size = 0x800, scoped, tag = 'input window, operand 1, single buffered']
    #allocation4 [shape = 's32[2]{0}', space=sflag, size = 0x8, scoped, tag = 'scoped memory for cnn_dpe_skip_forward.1']
    %8 = vsyncpa [#allocation4], 0
    loop: start=0, step=1, limit=5
    $region2: #{cnn_dpe_skip_forward.1} parent=1 // loop_pre_header
      _
    $region3: #{cnn_dpe_skip_forward.1} parent=1 // loop_header
      %s10 = sphi 0, %s14
      %p11 = scmp.ge.s32.totalorder %s10, 5
      %s20 = sphi 0, %s22
      %s23 = sphi 0, %s20
      %s24 = sphi 0, %s23
      %s40 = sphi 0, %s24
      %s44 = sphi 0, %s44
      %s46 = sphi 0, %s44
      %s47 = sphi 0, %s46
      %s61 = sphi 0, %s47
      %s65 = sphi 0, %s65
      %s67 = sphi 0, %s65
      %s68 = sphi 0, %s67
      %s82 = sphi 0, %s68
      %s88 = sphi 0, %s90
      %s91 = sphi 0, %s88
      %s92 = sphi 0, %s91
      %s108 = sphi 0, %s92
    $region4: #{cnn_dpe_skip_forward.1} parent=1 // loop_header_branch
      %13 = sbr.rel (%p11) target = $region8
    $region5: #{cnn_dpe_skip_forward.1} parent=1 // loop_body
      %s15 = ssub.s32 %s10, 1
      %s16 = ssub.s32 %s10, 2
      %s17 = sadd.s32 %s10, 1
      %s18 = ssub.s32 %s10, %s17
      %p19 = scmp.eq.s32.totalorder %s18, 0
      %s21 = sadd.s32 %s20, 1
      %s22 = scalar_select %p19, %s20, %s21
      %p25 = pneg %p19
      %p26 = scmp.eq.s32.totalorder %s10, 2
      %p27 = por %p25, %p26
      %p28 = scmp.ne.s32.totalorder %s20, %s23
      %p29 = scmp.eq.s32.totalorder %s10, 0
      %p30 = por %p28, %p29
      %p31 = scmp.ne.s32.totalorder %s20, %s23
      %p32 = scmp.eq.s32.totalorder %s15, 2
      %p33 = por %p31, %p32
      %p34 = scmp.ne.s32.totalorder %s23, %s24
      %p35 = scmp.eq.s32.totalorder %s15, 0
      %p36 = por %p34, %p35
      %p37 = scmp.ne.s32.totalorder %s23, %s24
      %p38 = scmp.eq.s32.totalorder %s16, 2
      %p39 = por %p37, %p38
      %p41 = scmp.ne.s32.totalorder %s24, %s40
      %p42 = scmp.eq.s32.totalorder %s16, 0
      %p43 = por %p41, %p42
      %s45 = sadd.s32 %s44, 1
      %p48 = scmp.eq.s32.totalorder %s10, 2
      %p49 = scmp.ne.s32.totalorder %s44, %s46
      %p50 = scmp.eq.s32.totalorder %s10, 0
      %p51 = por %p49, %p50
      %p52 = scmp.ne.s32.totalorder %s44, %s46
      %p53 = scmp.eq.s32.totalorder %s15, 2
      %p54 = por %p52, %p53
      %p55 = scmp.ne.s32.totalorder %s46, %s47
      %p56 = scmp.eq.s32.totalorder %s15, 0
      %p57 = por %p55, %p56
      %p58 = scmp.ne.s32.totalorder %s46, %s47
      %p59 = scmp.eq.s32.totalorder %s16, 2
      %p60 = por %p58, %p59
      %p62 = scmp.ne.s32.totalorder %s47, %s61
      %p63 = scmp.eq.s32.totalorder %s16, 0
      %p64 = por %p62, %p63
      %s66 = sadd.s32 %s65, 1
      %p69 = scmp.eq.s32.totalorder %s10, 2
      %p70 = scmp.ne.s32.totalorder %s65, %s67
      %p71 = scmp.eq.s32.totalorder %s10, 0
      %p72 = por %p70, %p71
      %p73 = scmp.ne.s32.totalorder %s65, %s67
      %p74 = scmp.eq.s32.totalorder %s15, 2
      %p75 = por %p73, %p74
      %p76 = scmp.ne.s32.totalorder %s67, %s68
      %p77 = scmp.eq.s32.totalorder %s15, 0
      %p78 = por %p76, %p77
      %p79 = scmp.ne.s32.totalorder %s67, %s68
      %p80 = scmp.eq.s32.totalorder %s16, 2
      %p81 = por %p79, %p80
      %p83 = scmp.ne.s32.totalorder %s68, %s82
      %p84 = scmp.eq.s32.totalorder %s16, 0
      %p85 = por %p83, %p84
      %s86 = ssub.s32 %s10, %s17
      %p87 = scmp.eq.s32.totalorder %s86, 0
      %s89 = sadd.s32 %s88, 1
      %s90 = scalar_select %p87, %s88, %s89
      %p93 = pneg %p87
      %p94 = scmp.eq.s32.totalorder %s10, 2
      %p95 = por %p93, %p94
      %p96 = scmp.ne.s32.totalorder %s88, %s91
      %p97 = scmp.eq.s32.totalorder %s10, 0
      %p98 = por %p96, %p97
      %p99 = scmp.ne.s32.totalorder %s88, %s91
      %p100 = scmp.eq.s32.totalorder %s15, 2
      %p101 = por %p99, %p100
      %p102 = scmp.ne.s32.totalorder %s91, %s92
      %p103 = scmp.eq.s32.totalorder %s15, 0
      %p104 = por %p102, %p103
      %p105 = scmp.ne.s32.totalorder %s91, %s92
      %p106 = scmp.eq.s32.totalorder %s16, 2
      %p107 = por %p105, %p106
      %p109 = scmp.ne.s32.totalorder %s92, %s108
      %p110 = scmp.eq.s32.totalorder %s16, 0
      %p111 = por %p109, %p110
      %p112 = scmp.le.s32.totalorder 1, %s10
      %p113 = scmp.lt.s32.totalorder %s10, 4
      %p114 = pnand %p112, %p113
      %p115 = pneg %p114
      // Predicated region
      $region9: #{cnn_dpe_skip_forward.1} parent=5 // pred_check
        _
      $region10: #{cnn_dpe_skip_forward.1} parent=5 // pred_check_branch
        %117 = sbr.rel (%p114) target = $region12
      $region11: #{cnn_dpe_skip_forward.1} parent=5 // pred_region
        %s118 = ssub.s32 %s10, 1
        // Predicated region
        $region13: #{cnn_dpe_skip_forward.1} parent=11 // pred_check
          %p119 = pneg %p57
        $region14: #{cnn_dpe_skip_forward.1} parent=11 // pred_check_branch
          %121 = sbr.rel (%p119) target = $region16
        $region15: #{cnn_dpe_skip_forward.1} parent=11 // pred_region
          %s123 = ssub.s32 64, 64
          %124 = vsyncadd [#allocation4], %s123
          %s126 = sshll.u32 %s1, 4
          %s127 = int_to_ptr.vmem [resolvable:$true] %s126
          %129 = dma.vmem_to_smem %s127, 64, [#allocation3], [#allocation4]
        $region16: #{cnn_dpe_skip_forward.1} parent=11 // pred_fallthru
          _
        // Predicated region
        $region17: #{cnn_dpe_skip_forward.1} parent=11 // pred_check
          %p130 = pneg %p78
        $region18: #{cnn_dpe_skip_forward.1} parent=11 // pred_check_branch
          %132 = sbr.rel (%p130) target = $region20
        $region19: #{cnn_dpe_skip_forward.1} parent=11 // pred_region
          _
        $region20: #{cnn_dpe_skip_forward.1} parent=11 // pred_fallthru
          _
      $region12: #{cnn_dpe_skip_forward.1} parent=5 // pred_fallthru
        _
      %p133 = scmp.lt.s32.totalorder %s10, 3
      // Predicated region
      $region21: #{cnn_dpe_skip_forward.1} parent=5 // pred_check
        %p134 = pneg %p133
      $region22: #{cnn_dpe_skip_forward.1} parent=5 // pred_check_branch
        %136 = sbr.rel (%p134) target = $region24
      $region23: #{cnn_dpe_skip_forward.1} parent=5 // pred_region
        // Predicated region
        $region25: #{cnn_dpe_skip_forward.1} parent=23 // pred_check
          %p137 = pneg %p30
        $region26: #{cnn_dpe_skip_forward.1} parent=23 // pred_check_branch
          %139 = sbr.rel (%p137) target = $region28
        $region27: #{cnn_dpe_skip_forward.1} parent=23 // pred_region
          %p140 = scmp.lt.s32.totalorder %s10, 2
          %s141 = scalar_select %p140, %s10, 2
          %s142 = smul.addr %s141, 3
          %s143 = smul.addr %s142, 8
          %s144 = scalar_lea.vmem %s0, %s143
        $region28: #{cnn_dpe_skip_forward.1} parent=23 // pred_fallthru
          _
      $region24: #{cnn_dpe_skip_forward.1} parent=5 // pred_fallthru
        _
      %p145 = scmp.le.s32.totalorder 1, %s10
      %p146 = scmp.lt.s32.totalorder %s10, 4
      %p147 = pnand %p145, %p146
      %p148 = pneg %p147
      // Predicated region
      $region29: #{cnn_dpe_skip_forward.1} parent=5 // pred_check
        _
      $region30: #{cnn_dpe_skip_forward.1} parent=5 // pred_check_branch
        %150 = sbr.rel (%p147) target = $region32
      $region31: #{cnn_dpe_skip_forward.1} parent=5 // pred_region
        %s151 = ssub.s32 %s10, 1
        // Predicated region
        $region33: #{cnn_dpe_skip_forward.1} parent=31 // pred_check
          %p152 = pneg %p57
        $region34: #{cnn_dpe_skip_forward.1} parent=31 // pred_check_branch
          %154 = sbr.rel (%p152) target = $region36
        $region35: #{cnn_dpe_skip_forward.1} parent=31 // pred_region
          %155 = dma.done [#allocation4], 64
        $region36: #{cnn_dpe_skip_forward.1} parent=31 // pred_fallthru
          _
        %156 = sfence
        %p157 = scmp.lt.s32.totalorder %s15, 2
        %s158 = scalar_select %p157, %s15, 2
        %s159 = smul.addr %s158, 3
        %s160 = smul.addr %s159, 8
        %s161 = scalar_lea.vmem %s0, %s160
        %p162 = pneg %p36
        %p163 = pneg %p33
        %p164 = pneg %p57
        %p165 = pneg %p54
        %p166 = pneg %p78
        %p167 = pneg %p75
        %p168 = pneg %p104
        %p169 = pneg %p101
        %p170 = scmp.lt.s32.totalorder %s15, 2
        %s171 = scalar_select %p170, %s15, 2
        %s172 = smul.addr %s171, 2
        %s173 = smul.addr %s172, 8
        %s174 = scalar_lea.vmem %s3, %s173
        %p175 = scmp.lt.s32.totalorder %s15, 2
        %s176 = scalar_select %p175, %s15, 2
        %s177 = smul.addr %s176, 3
        %s178 = smul.addr %s177, 8
        %s179 = scalar_lea.vmem %s0, %s178
        %p180 = scmp.lt.s32.totalorder %s15, 2
        %s181 = scalar_select %p180, %s15, 2
        %s182 = smul.addr %s181, 2
        %s183 = smul.addr %s182, 8
        %s184 = scalar_lea.vmem %s3, %s183
        %185 = vst [vmem:[#allocation2] sm:$0x7] 0.0
        %186 = vst [vmem:[#allocation2 + $0x13] sm:$0x1f] 0.0
        %v187 = vld [vmem:[%s2] sm:$0x1]
        %v189 = vlaneseq
        %v190 = vshrl.u32 %v189, 7
        %v191 = vsub.s32 0, %v190
        %v192 = vrot.slane %v187, %v191
        %vm194 = vcmp.gt.f32.partialorder %v192, 0.0
        %s195 = smul.u32 %s15, 128
        %s196 = sld [smem:[#allocation3 + %s195]]
        %v197 = vld [vmem:[%s179 + $0x2] sm:$0xff]
        %v198 = vld [vmem:[%s179 + $0xa] sm:$0xff]
        %v199 = vstv %s196
        %v200 = vmul.f32 %v199, %v197
        %v201 = vmul.f32 %v199, %v198
        %s202 = sadd.s32 %s195, 3
        %s203 = sld [smem:[#allocation3 + %s202]]
        %v204 = vld [vmem:[%s179 + $0x3] sm:$0xff]
        %v205 = vld [vmem:[%s179 + $0xb] sm:$0xff]
        %v206 = vstv %s203
        %v207 = vmul.f32 %v206, %v204
        %v208 = vmul.f32 %v206, %v205
        %v209 = vadd.f32 %v200, %v207
        %v210 = vadd.f32 %v201, %v208
        %s211 = sadd.s32 %s195, 6
        %s212 = sld [smem:[#allocation3 + %s211]]
        %v213 = vld [vmem:[%s179 + $0x4] sm:$0xff]
        %v214 = vld [vmem:[%s179 + $0xc] sm:$0xff]
        %v215 = vstv %s212
        %v216 = vmul.f32 %v215, %v213
        %v217 = vmul.f32 %v215, %v214
        %v218 = vadd.f32 %v209, %v216
        %v219 = vadd.f32 %v210, %v217
        %220 = vrot.lane.b32.xlu0 %v218, 1
        %v221 = vpop.permute.xlu0 %220
        %222 = vrot.lane.b32.xlu0 %v219, 1
        %v223 = vpop.permute.xlu0 %222
        %v224 = vadd.f32 %v221, 0.0
        %v225 = vadd.f32 %v223, 0.0
        %s226 = sadd.s32 %s195, 1
        %s227 = sld [smem:[#allocation3 + %s226]]
        %v228 = vstv %s227
        %v229 = vmul.f32 %v228, %v197
        %v230 = vmul.f32 %v228, %v198
        %s231 = sadd.s32 %s195, 4
        %s232 = sld [smem:[#allocation3 + %s231]]
        %v233 = vstv %s232
        %v234 = vmul.f32 %v233, %v204
        %v235 = vmul.f32 %v233, %v205
        %v236 = vadd.f32 %v229, %v234
        %v237 = vadd.f32 %v230, %v235
        %s238 = sadd.s32 %s195, 7
        %s239 = sld [smem:[#allocation3 + %s238]]
        %v240 = vstv %s239
        %v241 = vmul.f32 %v240, %v213
        %v242 = vmul.f32 %v240, %v214
        %v243 = vadd.f32 %v236, %v241
        %v244 = vadd.f32 %v237, %v242
        %v245 = vadd.f32 %v243, 0.0
        %v246 = vadd.f32 %v244, 0.0
        %s247 = sadd.s32 %s195, 2
        %s248 = sld [smem:[#allocation3 + %s247]]
        %v249 = vstv %s248
        %v250 = vmul.f32 %v249, %v197
        %v251 = vmul.f32 %v249, %v198
        %s252 = sadd.s32 %s195, 5
        %s253 = sld [smem:[#allocation3 + %s252]]
        %v254 = vstv %s253
        %v255 = vmul.f32 %v254, %v204
        %v256 = vmul.f32 %v254, %v205
        %v257 = vadd.f32 %v250, %v255
        %v258 = vadd.f32 %v251, %v256
        %s259 = sadd.s32 %s195, 8
        %s260 = sld [smem:[#allocation3 + %s259]]
        %v261 = vstv %s260
        %v262 = vmul.f32 %v261, %v213
        %v263 = vmul.f32 %v261, %v214
        %v264 = vadd.f32 %v257, %v262
        %v265 = vadd.f32 %v258, %v263
        %266 = vrot.lane.b32.xlu0 %v264, 127
        %v267 = vpop.permute.xlu0 %266
        %268 = vrot.lane.b32.xlu0 %v265, 127
        %v269 = vpop.permute.xlu0 %268
        %v270 = vadd.f32 %v224, %v267
        %v271 = vadd.f32 %v225, %v269
        %v272 = vadd.f32 %v270, %v245
        %v273 = vadd.f32 %v271, %v246
        %s274 = sadd.s32 %s195, 83
        %s275 = sld [smem:[#allocation3 + %s274]]
        %v276 = vstv %s275
        %v277 = vadd.f32 %v272, %v276
        %v278 = vadd.f32 %v273, %v276
        %vm279 = vcmp.gt.f32.partialorder %v277, 0.0
        %vm280 = vcmp.gt.f32.partialorder %v278, 0.0
        %v281 = vmul.f32 %v277, 0.01
        %v282 = vmul.f32 %v278, 0.01
        %v283 = vsel %vm279, %v277, %v281
        %v284 = vsel %vm280, %v278, %v282
        %v285 = vsel %vm194, %v283, 0.0
        %v286 = vsel %vm194, %v284, 0.0
        %287 = vst [vmem:[#allocation2 + $0x3] sm:$0xff] %v285
        %288 = vst [vmem:[#allocation2 + $0xb] sm:$0xff] %v286
        %s289 = sadd.s32 %s195, 9
        %s290 = sld [smem:[#allocation3 + %s289]]
        %v291 = vld [vmem:[#allocation2 + $0x1] sm:$0xff]
        %v292 = vld [vmem:[#allocation2 + $0x9] sm:$0xff]
        %v293 = vstv %s290
        %v294 = vmul.f32 %v293, %v291
        %v295 = vmul.f32 %v293, %v292
        %s296 = sadd.s32 %s195, 14
        %s297 = sld [smem:[#allocation3 + %s296]]
        %v298 = vld [vmem:[#allocation2 + $0x2] sm:$0xff]
        %v299 = vld [vmem:[#allocation2 + $0xa] sm:$0xff]
        %v300 = vstv %s297
        %v301 = vmul.f32 %v300, %v298
        %v302 = vmul.f32 %v300, %v299
        %v303 = vadd.f32 %v294, %v301
        %v304 = vadd.f32 %v295, %v302
        %s305 = sadd.s32 %s195, 19
        %s306 = sld [smem:[#allocation3 + %s305]]
        %v307 = vld [vmem:[#allocation2 + $0x3] sm:$0xff]
        %v308 = vld [vmem:[#allocation2 + $0xb] sm:$0xff]
        %v309 = vstv %s306
        %v310 = vmul.f32 %v309, %v307
        %v311 = vmul.f32 %v309, %v308
        %v312 = vadd.f32 %v303, %v310
        %v313 = vadd.f32 %v304, %v311
        %s314 = sadd.s32 %s195, 24
        %s315 = sld [smem:[#allocation3 + %s314]]
        %v316 = vld [vmem:[#allocation2 + $0x4] sm:$0xff]
        %v317 = vld [vmem:[#allocation2 + $0xc] sm:$0xff]
        %v318 = vstv %s315
        %v319 = vmul.f32 %v318, %v316
        %v320 = vmul.f32 %v318, %v317
        %v321 = vadd.f32 %v312, %v319
        %v322 = vadd.f32 %v313, %v320
        %s323 = sadd.s32 %s195, 29
        %s324 = sld [smem:[#allocation3 + %s323]]
        %v325 = vld [vmem:[#allocation2 + $0x5] sm:$0xff]
        %v326 = vld [vmem:[#allocation2 + $0xd] sm:$0xff]
        %v327 = vstv %s324
        %v328 = vmul.f32 %v327, %v325
        %v329 = vmul.f32 %v327, %v326
        %v330 = vadd.f32 %v321, %v328
        %v331 = vadd.f32 %v322, %v329
        %332 = vrot.lane.b32.xlu0 %v330, 2
        %v333 = vpop.permute.xlu0 %332
        %334 = vrot.lane.b32.xlu0 %v331, 2
        %v335 = vpop.permute.xlu0 %334
        %v336 = vadd.f32 %v333, 0.0
        %v337 = vadd.f32 %v335, 0.0
        %s338 = sadd.s32 %s195, 10
        %s339 = sld [smem:[#allocation3 + %s338]]
        %v340 = vstv %s339
        %v341 = vmul.f32 %v340, %v291
        %v342 = vmul.f32 %v340, %v292
        %s343 = sadd.s32 %s195, 15
        %s344 = sld [smem:[#allocation3 + %s343]]
        %v345 = vstv %s344
        %v346 = vmul.f32 %v345, %v298
        %v347 = vmul.f32 %v345, %v299
        %v348 = vadd.f32 %v341, %v346
        %v349 = vadd.f32 %v342, %v347
        %s350 = sadd.s32 %s195, 20
        %s351 = sld [smem:[#allocation3 + %s350]]
        %v352 = vstv %s351
        %v353 = vmul.f32 %v352, %v307
        %v354 = vmul.f32 %v352, %v308
        %v355 = vadd.f32 %v348, %v353
        %v356 = vadd.f32 %v349, %v354
        %s357 = sadd.s32 %s195, 25
        %s358 = sld [smem:[#allocation3 + %s357]]
        %v359 = vstv %s358
        %v360 = vmul.f32 %v359, %v316
        %v361 = vmul.f32 %v359, %v317
        %v362 = vadd.f32 %v355, %v360
        %v363 = vadd.f32 %v356, %v361
        %s364 = sadd.s32 %s195, 30
        %s365 = sld [smem:[#allocation3 + %s364]]
        %v366 = vstv %s365
        %v367 = vmul.f32 %v366, %v325
        %v368 = vmul.f32 %v366, %v326
        %v369 = vadd.f32 %v362, %v367
        %v370 = vadd.f32 %v363, %v368
        %371 = vrot.lane.b32.xlu0 %v369, 1
        %v372 = vpop.permute.xlu0 %371
        %373 = vrot.lane.b32.xlu0 %v370, 1
        %v374 = vpop.permute.xlu0 %373
        %v375 = vadd.f32 %v372, 0.0
        %v376 = vadd.f32 %v374, 0.0
        %s377 = sadd.s32 %s195, 11
        %s378 = sld [smem:[#allocation3 + %s377]]
        %v379 = vstv %s378
        %v380 = vmul.f32 %v379, %v291
        %v381 = vmul.f32 %v379, %v292
        %s382 = sadd.s32 %s195, 16
        %s383 = sld [smem:[#allocation3 + %s382]]
        %v384 = vstv %s383
        %v385 = vmul.f32 %v384, %v298
        %v386 = vmul.f32 %v384, %v299
        %v387 = vadd.f32 %v380, %v385
        %v388 = vadd.f32 %v381, %v386
        %s389 = sadd.s32 %s195, 21
        %s390 = sld [smem:[#allocation3 + %s389]]
        %v391 = vstv %s390
        %v392 = vmul.f32 %v391, %v307
        %v393 = vmul.f32 %v391, %v308
        %v394 = vadd.f32 %v387, %v392
        %v395 = vadd.f32 %v388, %v393
        %s396 = sadd.s32 %s195, 26
        %s397 = sld [smem:[#allocation3 + %s396]]
        %v398 = vstv %s397
        %v399 = vmul.f32 %v398, %v316
        %v400 = vmul.f32 %v398, %v317
        %v401 = vadd.f32 %v394, %v399
        %v402 = vadd.f32 %v395, %v400
        %s403 = sadd.s32 %s195, 31
        %s404 = sld [smem:[#allocation3 + %s403]]
        %v405 = vstv %s404
        %v406 = vmul.f32 %v405, %v325
        %v407 = vmul.f32 %v405, %v326
        %v408 = vadd.f32 %v401, %v406
        %v409 = vadd.f32 %v402, %v407
        %v410 = vadd.f32 %v336, %v408
        %v411 = vadd.f32 %v337, %v409
        %s412 = sadd.s32 %s195, 12
        %s413 = sld [smem:[#allocation3 + %s412]]
        %v414 = vstv %s413
        %v415 = vmul.f32 %v414, %v291
        %v416 = vmul.f32 %v414, %v292
        %s417 = sadd.s32 %s195, 17
        %s418 = sld [smem:[#allocation3 + %s417]]
        %v419 = vstv %s418
        %v420 = vmul.f32 %v419, %v298
        %v421 = vmul.f32 %v419, %v299
        %v422 = vadd.f32 %v415, %v420
        %v423 = vadd.f32 %v416, %v421
        %s424 = sadd.s32 %s195, 22
        %s425 = sld [smem:[#allocation3 + %s424]]
        %v426 = vstv %s425
        %v427 = vmul.f32 %v426, %v307
        %v428 = vmul.f32 %v426, %v308
        %v429 = vadd.f32 %v422, %v427
        %v430 = vadd.f32 %v423, %v428
        %s431 = sadd.s32 %s195, 27
        %s432 = sld [smem:[#allocation3 + %s431]]
        %v433 = vstv %s432
        %v434 = vmul.f32 %v433, %v316
        %v435 = vmul.f32 %v433, %v317
        %v436 = vadd.f32 %v429, %v434
        %v437 = vadd.f32 %v430, %v435
        %s438 = sadd.s32 %s195, 32
        %s439 = sld [smem:[#allocation3 + %s438]]
        %v440 = vstv %s439
        %v441 = vmul.f32 %v440, %v325
        %v442 = vmul.f32 %v440, %v326
        %v443 = vadd.f32 %v436, %v441
        %v444 = vadd.f32 %v437, %v442
        %445 = vrot.lane.b32.xlu0 %v443, 127
        %v446 = vpop.permute.xlu0 %445
        %447 = vrot.lane.b32.xlu0 %v444, 127
        %v448 = vpop.permute.xlu0 %447
        %v449 = vadd.f32 %v375, %v446
        %v450 = vadd.f32 %v376, %v448
        %s451 = sadd.s32 %s195, 13
        %s452 = sld [smem:[#allocation3 + %s451]]
        %v453 = vstv %s452
        %v454 = vmul.f32 %v453, %v291
        %v455 = vmul.f32 %v453, %v292
        %s456 = sadd.s32 %s195, 18
        %s457 = sld [smem:[#allocation3 + %s456]]
        %v458 = vstv %s457
        %v459 = vmul.f32 %v458, %v298
        %v460 = vmul.f32 %v458, %v299
        %v461 = vadd.f32 %v454, %v459
        %v462 = vadd.f32 %v455, %v460
        %s463 = sadd.s32 %s195, 23
        %s464 = sld [smem:[#allocation3 + %s463]]
        %v465 = vstv %s464
        %v466 = vmul.f32 %v465, %v307
        %v467 = vmul.f32 %v465, %v308
        %v468 = vadd.f32 %v461, %v466
        %v469 = vadd.f32 %v462, %v467
        %s470 = sadd.s32 %s195, 28
        %s471 = sld [smem:[#allocation3 + %s470]]
        %v472 = vstv %s471
        %v473 = vmul.f32 %v472, %v316
        %v474 = vmul.f32 %v472, %v317
        %v475 = vadd.f32 %v468, %v473
        %v476 = vadd.f32 %v469, %v474
        %s477 = sadd.s32 %s195, 33
        %s478 = sld [smem:[#allocation3 + %s477]]
        %v479 = vstv %s478
        %v480 = vmul.f32 %v479, %v325
        %v481 = vmul.f32 %v479, %v326
        %v482 = vadd.f32 %v475, %v480
        %v483 = vadd.f32 %v476, %v481
        %484 = vrot.lane.b32.xlu0 %v482, 126
        %v485 = vpop.permute.xlu0 %484
        %486 = vrot.lane.b32.xlu0 %v483, 126
        %v487 = vpop.permute.xlu0 %486
        %v488 = vadd.f32 %v410, %v485
        %v489 = vadd.f32 %v411, %v487
        %v490 = vadd.f32 %v488, %v449
        %v491 = vadd.f32 %v489, %v450
        %s492 = sadd.s32 %s195, 84
        %s493 = sld [smem:[#allocation3 + %s492]]
        %v494 = vstv %s493
        %v495 = vadd.f32 %v490, %v494
        %v496 = vadd.f32 %v491, %v494
        %vm497 = vcmp.gt.f32.partialorder %v495, 0.0
        %vm498 = vcmp.gt.f32.partialorder %v496, 0.0
        %v499 = vmul.f32 %v495, 0.01
        %v500 = vmul.f32 %v496, 0.01
        %v501 = vsel %vm497, %v495, %v499
        %v502 = vsel %vm498, %v496, %v500
        %v503 = vsel %vm194, %v501, 0.0
        %v504 = vsel %vm194, %v502, 0.0
        %505 = vst [vmem:[#allocation2 + $0x3] sm:$0xff] %v503
        %506 = vst [vmem:[#allocation2 + $0xb] sm:$0xff] %v504
        %s507 = sadd.s32 %s195, 34
        %s508 = sld [smem:[#allocation3 + %s507]]
        %v509 = vld [vmem:[#allocation2] sm:$0xff]
        %v510 = vld [vmem:[#allocation2 + $0x8] sm:$0xff]
        %v511 = vstv %s508
        %v512 = vmul.f32 %v511, %v509
        %v513 = vmul.f32 %v511, %v510
        %s514 = sadd.s32 %s195, 41
        %s515 = sld [smem:[#allocation3 + %s514]]
        %v516 = vld [vmem:[#allocation2 + $0x1] sm:$0xff]
        %v517 = vld [vmem:[#allocation2 + $0x9] sm:$0xff]
        %v518 = vstv %s515
        %v519 = vmul.f32 %v518, %v516
        %v520 = vmul.f32 %v518, %v517
        %v521 = vadd.f32 %v512, %v519
        %v522 = vadd.f32 %v513, %v520
        %s523 = sadd.s32 %s195, 48
        %s524 = sld [smem:[#allocation3 + %s523]]
        %v525 = vld [vmem:[#allocation2 + $0x2] sm:$0xff]
        %v526 = vld [vmem:[#allocation2 + $0xa] sm:$0xff]
        %v527 = vstv %s524
        %v528 = vmul.f32 %v527, %v525
        %v529 = vmul.f32 %v527, %v526
        %v530 = vadd.f32 %v521, %v528
        %v531 = vadd.f32 %v522, %v529
        %s532 = sadd.s32 %s195, 55
        %s533 = sld [smem:[#allocation3 + %s532]]
        %v534 = vld [vmem:[#allocation2 + $0x3] sm:$0xff]
        %v535 = vld [vmem:[#allocation2 + $0xb] sm:$0xff]
        %v536 = vstv %s533
        %v537 = vmul.f32 %v536, %v534
        %v538 = vmul.f32 %v536, %v535
        %v539 = vadd.f32 %v530, %v537
        %v540 = vadd.f32 %v531, %v538
        %s541 = sadd.s32 %s195, 62
        %s542 = sld [smem:[#allocation3 + %s541]]
        %v543 = vld [vmem:[#allocation2 + $0x4] sm:$0xff]
        %v544 = vld [vmem:[#allocation2 + $0xc] sm:$0xff]
        %v545 = vstv %s542
        %v546 = vmul.f32 %v545, %v543
        %v547 = vmul.f32 %v545, %v544
        %v548 = vadd.f32 %v539, %v546
        %v549 = vadd.f32 %v540, %v547
        %s550 = sadd.s32 %s195, 69
        %s551 = sld [smem:[#allocation3 + %s550]]
        %v552 = vld [vmem:[#allocation2 + $0x5] sm:$0xff]
        %v553 = vld [vmem:[#allocation2 + $0xd] sm:$0xff]
        %v554 = vstv %s551
        %v555 = vmul.f32 %v554, %v552
        %v556 = vmul.f32 %v554, %v553
        %v557 = vadd.f32 %v548, %v555
        %v558 = vadd.f32 %v549, %v556
        %s559 = sadd.s32 %s195, 76
        %s560 = sld [smem:[#allocation3 + %s559]]
        %v561 = vld [vmem:[#allocation2 + $0x6] sm:$0xff]
        %v562 = vld [vmem:[#allocation2 + $0xe] sm:$0xff]
        %v563 = vstv %s560
        %v564 = vmul.f32 %v563, %v561
        %v565 = vmul.f32 %v563, %v562
        %v566 = vadd.f32 %v557, %v564
        %v567 = vadd.f32 %v558, %v565
        %568 = vrot.lane.b32.xlu0 %v566, 3
        %v569 = vpop.permute.xlu0 %568
        %570 = vrot.lane.b32.xlu0 %v567, 3
        %v571 = vpop.permute.xlu0 %570
        %v572 = vadd.f32 %v569, 0.0
        %v573 = vadd.f32 %v571, 0.0
        %s574 = sadd.s32 %s195, 35
        %s575 = sld [smem:[#allocation3 + %s574]]
        %v576 = vstv %s575
        %v577 = vmul.f32 %v576, %v509
        %v578 = vmul.f32 %v576, %v510
        %s579 = sadd.s32 %s195, 42
        %s580 = sld [smem:[#allocation3 + %s579]]
        %v581 = vstv %s580
        %v582 = vmul.f32 %v581, %v516
        %v583 = vmul.f32 %v581, %v517
        %v584 = vadd.f32 %v577, %v582
        %v585 = vadd.f32 %v578, %v583
        %s586 = sadd.s32 %s195, 49
        %s587 = sld [smem:[#allocation3 + %s586]]
        %v588 = vstv %s587
        %v589 = vmul.f32 %v588, %v525
        %v590 = vmul.f32 %v588, %v526
        %v591 = vadd.f32 %v584, %v589
        %v592 = vadd.f32 %v585, %v590
        %s593 = sadd.s32 %s195, 56
        %s594 = sld [smem:[#allocation3 + %s593]]
        %v595 = vstv %s594
        %v596 = vmul.f32 %v595, %v534
        %v597 = vmul.f32 %v595, %v535
        %v598 = vadd.f32 %v591, %v596
        %v599 = vadd.f32 %v592, %v597
        %s600 = sadd.s32 %s195, 63
        %s601 = sld [smem:[#allocation3 + %s600]]
        %v602 = vstv %s601
        %v603 = vmul.f32 %v602, %v543
        %v604 = vmul.f32 %v602, %v544
        %v605 = vadd.f32 %v598, %v603
        %v606 = vadd.f32 %v599, %v604
        %s607 = sadd.s32 %s195, 70
        %s608 = sld [smem:[#allocation3 + %s607]]
        %v609 = vstv %s608
        %v610 = vmul.f32 %v609, %v552
        %v611 = vmul.f32 %v609, %v553
        %v612 = vadd.f32 %v605, %v610
        %v613 = vadd.f32 %v606, %v611
        %s614 = sadd.s32 %s195, 77
        %s615 = sld [smem:[#allocation3 + %s614]]
        %v616 = vstv %s615
        %v617 = vmul.f32 %v616, %v561
        %v618 = vmul.f32 %v616, %v562
        %v619 = vadd.f32 %v612, %v617
        %v620 = vadd.f32 %v613, %v618
        %621 = vrot.lane.b32.xlu0 %v619, 2
        %v622 = vpop.permute.xlu0 %621
        %623 = vrot.lane.b32.xlu0 %v620, 2
        %v624 = vpop.permute.xlu0 %623
        %v625 = vadd.f32 %v622, 0.0
        %v626 = vadd.f32 %v624, 0.0
        %s627 = sadd.s32 %s195, 36
        %s628 = sld [smem:[#allocation3 + %s627]]
        %v629 = vstv %s628
        %v630 = vmul.f32 %v629, %v509
        %v631 = vmul.f32 %v629, %v510
        %s632 = sadd.s32 %s195, 43
        %s633 = sld [smem:[#allocation3 + %s632]]
        %v634 = vstv %s633
        %v635 = vmul.f32 %v634, %v516
        %v636 = vmul.f32 %v634, %v517
        %v637 = vadd.f32 %v630, %v635
        %v638 = vadd.f32 %v631, %v636
        %s639 = sadd.s32 %s195, 50
        %s640 = sld [smem:[#allocation3 + %s639]]
        %v641 = vstv %s640
        %v642 = vmul.f32 %v641, %v525
        %v643 = vmul.f32 %v641, %v526
        %v644 = vadd.f32 %v637, %v642
        %v645 = vadd.f32 %v638, %v643
        %s646 = sadd.s32 %s195, 57
        %s647 = sld [smem:[#allocation3 + %s646]]
        %v648 = vstv %s647
        %v649 = vmul.f32 %v648, %v534
        %v650 = vmul.f32 %v648, %v535
        %v651 = vadd.f32 %v644, %v649
        %v652 = vadd.f32 %v645, %v650
        %s653 = sadd.s32 %s195, 64
        %s654 = sld [smem:[#allocation3 + %s653]]
        %v655 = vstv %s654
        %v656 = vmul.f32 %v655, %v543
        %v657 = vmul.f32 %v655, %v544
        %v658 = vadd.f32 %v651, %v656
        %v659 = vadd.f32 %v652, %v657
        %s660 = sadd.s32 %s195, 71
        %s661 = sld [smem:[#allocation3 + %s660]]
        %v662 = vstv %s661
        %v663 = vmul.f32 %v662, %v552
        %v664 = vmul.f32 %v662, %v553
        %v665 = vadd.f32 %v658, %v663
        %v666 = vadd.f32 %v659, %v664
        %s667 = sadd.s32 %s195, 78
        %s668 = sld [smem:[#allocation3 + %s667]]
        %v669 = vstv %s668
        %v670 = vmul.f32 %v669, %v561
        %v671 = vmul.f32 %v669, %v562
        %v672 = vadd.f32 %v665, %v670
        %v673 = vadd.f32 %v666, %v671
        %674 = vrot.lane.b32.xlu0 %v672, 1
        %v675 = vpop.permute.xlu0 %674
        %676 = vrot.lane.b32.xlu0 %v673, 1
        %v677 = vpop.permute.xlu0 %676
        %v678 = vadd.f32 %v572, %v675
        %v679 = vadd.f32 %v573, %v677
        %s680 = sadd.s32 %s195, 37
        %s681 = sld [smem:[#allocation3 + %s680]]
        %v682 = vstv %s681
        %v683 = vmul.f32 %v682, %v509
        %v684 = vmul.f32 %v682, %v510
        %s685 = sadd.s32 %s195, 44
        %s686 = sld [smem:[#allocation3 + %s685]]
        %v687 = vstv %s686
        %v688 = vmul.f32 %v687, %v516
        %v689 = vmul.f32 %v687, %v517
        %v690 = vadd.f32 %v683, %v688
        %v691 = vadd.f32 %v684, %v689
        %s692 = sadd.s32 %s195, 51
        %s693 = sld [smem:[#allocation3 + %s692]]
        %v694 = vstv %s693
        %v695 = vmul.f32 %v694, %v525
        %v696 = vmul.f32 %v694, %v526
        %v697 = vadd.f32 %v690, %v695
        %v698 = vadd.f32 %v691, %v696
        %s699 = sadd.s32 %s195, 58
        %s700 = sld [smem:[#allocation3 + %s699]]
        %v701 = vstv %s700
        %v702 = vmul.f32 %v701, %v534
        %v703 = vmul.f32 %v701, %v535
        %v704 = vadd.f32 %v697, %v702
        %v705 = vadd.f32 %v698, %v703
        %s706 = sadd.s32 %s195, 65
        %s707 = sld [smem:[#allocation3 + %s706]]
        %v708 = vstv %s707
        %v709 = vmul.f32 %v708, %v543
        %v710 = vmul.f32 %v708, %v544
        %v711 = vadd.f32 %v704, %v709
        %v712 = vadd.f32 %v705, %v710
        %s713 = sadd.s32 %s195, 72
        %s714 = sld [smem:[#allocation3 + %s713]]
        %v715 = vstv %s714
        %v716 = vmul.f32 %v715, %v552
        %v717 = vmul.f32 %v715, %v553
        %v718 = vadd.f32 %v711, %v716
        %v719 = vadd.f32 %v712, %v717
        %s720 = sadd.s32 %s195, 79
        %s721 = sld [smem:[#allocation3 + %s720]]
        %v722 = vstv %s721
        %v723 = vmul.f32 %v722, %v561
        %v724 = vmul.f32 %v722, %v562
        %v725 = vadd.f32 %v718, %v723
        %v726 = vadd.f32 %v719, %v724
        %v727 = vadd.f32 %v625, %v725
        %v728 = vadd.f32 %v626, %v726
        %s729 = sadd.s32 %s195, 38
        %s730 = sld [smem:[#allocation3 + %s729]]
        %v731 = vstv %s730
        %v732 = vmul.f32 %v731, %v509
        %v733 = vmul.f32 %v731, %v510
        %s734 = sadd.s32 %s195, 45
        %s735 = sld [smem:[#allocation3 + %s734]]
        %v736 = vstv %s735
        %v737 = vmul.f32 %v736, %v516
        %v738 = vmul.f32 %v736, %v517
        %v739 = vadd.f32 %v732, %v737
        %v740 = vadd.f32 %v733, %v738
        %s741 = sadd.s32 %s195, 52
        %s742 = sld [smem:[#allocation3 + %s741]]
        %v743 = vstv %s742
        %v744 = vmul.f32 %v743, %v525
        %v745 = vmul.f32 %v743, %v526
        %v746 = vadd.f32 %v739, %v744
        %v747 = vadd.f32 %v740, %v745
        %s748 = sadd.s32 %s195, 59
        %s749 = sld [smem:[#allocation3 + %s748]]
        %v750 = vstv %s749
        %v751 = vmul.f32 %v750, %v534
        %v752 = vmul.f32 %v750, %v535
        %v753 = vadd.f32 %v746, %v751
        %v754 = vadd.f32 %v747, %v752
        %s755 = sadd.s32 %s195, 66
        %s756 = sld [smem:[#allocation3 + %s755]]
        %v757 = vstv %s756
        %v758 = vmul.f32 %v757, %v543
        %v759 = vmul.f32 %v757, %v544
        %v760 = vadd.f32 %v753, %v758
        %v761 = vadd.f32 %v754, %v759
        %s762 = sadd.s32 %s195, 73
        %s763 = sld [smem:[#allocation3 + %s762]]
        %v764 = vstv %s763
        %v765 = vmul.f32 %v764, %v552
        %v766 = vmul.f32 %v764, %v553
        %v767 = vadd.f32 %v760, %v765
        %v768 = vadd.f32 %v761, %v766
        %s769 = sadd.s32 %s195, 80
        %s770 = sld [smem:[#allocation3 + %s769]]
        %v771 = vstv %s770
        %v772 = vmul.f32 %v771, %v561
        %v773 = vmul.f32 %v771, %v562
        %v774 = vadd.f32 %v767, %v772
        %v775 = vadd.f32 %v768, %v773
        %776 = vrot.lane.b32.xlu0 %v774, 127
        %v777 = vpop.permute.xlu0 %776
        %778 = vrot.lane.b32.xlu0 %v775, 127
        %v779 = vpop.permute.xlu0 %778
        %v780 = vadd.f32 %v678, %v777
        %v781 = vadd.f32 %v679, %v779
        %s782 = sadd.s32 %s195, 39
        %s783 = sld [smem:[#allocation3 + %s782]]
        %v784 = vstv %s783
        %v785 = vmul.f32 %v784, %v509
        %v786 = vmul.f32 %v784, %v510
        %s787 = sadd.s32 %s195, 46
        %s788 = sld [smem:[#allocation3 + %s787]]
        %v789 = vstv %s788
        %v790 = vmul.f32 %v789, %v516
        %v791 = vmul.f32 %v789, %v517
        %v792 = vadd.f32 %v785, %v790
        %v793 = vadd.f32 %v786, %v791
        %s794 = sadd.s32 %s195, 53
        %s795 = sld [smem:[#allocation3 + %s794]]
        %v796 = vstv %s795
        %v797 = vmul.f32 %v796, %v525
        %v798 = vmul.f32 %v796, %v526
        %v799 = vadd.f32 %v792, %v797
        %v800 = vadd.f32 %v793, %v798
        %s801 = sadd.s32 %s195, 60
        %s802 = sld [smem:[#allocation3 + %s801]]
        %v803 = vstv %s802
        %v804 = vmul.f32 %v803, %v534
        %v805 = vmul.f32 %v803, %v535
        %v806 = vadd.f32 %v799, %v804
        %v807 = vadd.f32 %v800, %v805
        %s808 = sadd.s32 %s195, 67
        %s809 = sld [smem:[#allocation3 + %s808]]
        %v810 = vstv %s809
        %v811 = vmul.f32 %v810, %v543
        %v812 = vmul.f32 %v810, %v544
        %v813 = vadd.f32 %v806, %v811
        %v814 = vadd.f32 %v807, %v812
        %s815 = sadd.s32 %s195, 74
        %s816 = sld [smem:[#allocation3 + %s815]]
        %v817 = vstv %s816
        %v818 = vmul.f32 %v817, %v552
        %v819 = vmul.f32 %v817, %v553
        %v820 = vadd.f32 %v813, %v818
        %v821 = vadd.f32 %v814, %v819
        %s822 = sadd.s32 %s195, 81
        %s823 = sld [smem:[#allocation3 + %s822]]
        %v824 = vstv %s823
        %v825 = vmul.f32 %v824, %v561
        %v826 = vmul.f32 %v824, %v562
        %v827 = vadd.f32 %v820, %v825
        %v828 = vadd.f32 %v821, %v826
        %829 = vrot.lane.b32.xlu0 %v827, 126
        %v830 = vpop.permute.xlu0 %829
        %831 = vrot.lane.b32.xlu0 %v828, 126
        %v832 = vpop.permute.xlu0 %831
        %v833 = vadd.f32 %v727, %v830
        %v834 = vadd.f32 %v728, %v832
        %s835 = sadd.s32 %s195, 40
        %s836 = sld [smem:[#allocation3 + %s835]]
        %v837 = vstv %s836
        %v838 = vmul.f32 %v837, %v509
        %v839 = vmul.f32 %v837, %v510
        %s840 = sadd.s32 %s195, 47
        %s841 = sld [smem:[#allocation3 + %s840]]
        %v842 = vstv %s841
        %v843 = vmul.f32 %v842, %v516
        %v844 = vmul.f32 %v842, %v517
        %v845 = vadd.f32 %v838, %v843
        %v846 = vadd.f32 %v839, %v844
        %s847 = sadd.s32 %s195, 54
        %s848 = sld [smem:[#allocation3 + %s847]]
        %v849 = vstv %s848
        %v850 = vmul.f32 %v849, %v525
        %v851 = vmul.f32 %v849, %v526
        %v852 = vadd.f32 %v845, %v850
        %v853 = vadd.f32 %v846, %v851
        %s854 = sadd.s32 %s195, 61
        %s855 = sld [smem:[#allocation3 + %s854]]
        %v856 = vstv %s855
        %v857 = vmul.f32 %v856, %v534
        %v858 = vmul.f32 %v856, %v535
        %v859 = vadd.f32 %v852, %v857
        %v860 = vadd.f32 %v853, %v858
        %s861 = sadd.s32 %s195, 68
        %s862 = sld [smem:[#allocation3 + %s861]]
        %v863 = vstv %s862
        %v864 = vmul.f32 %v863, %v543
        %v865 = vmul.f32 %v863, %v544
        %v866 = vadd.f32 %v859, %v864
        %v867 = vadd.f32 %v860, %v865
        %s868 = sadd.s32 %s195, 75
        %s869 = sld [smem:[#allocation3 + %s868]]
        %v870 = vstv %s869
        %v871 = vmul.f32 %v870, %v552
        %v872 = vmul.f32 %v870, %v553
        %v873 = vadd.f32 %v866, %v871
        %v874 = vadd.f32 %v867, %v872
        %s875 = sadd.s32 %s195, 82
        %s876 = sld [smem:[#allocation3 + %s875]]
        %v877 = vstv %s876
        %v878 = vmul.f32 %v877, %v561
        %v879 = vmul.f32 %v877, %v562
        %v880 = vadd.f32 %v873, %v878
        %v881 = vadd.f32 %v874, %v879
        %882 = vrot.lane.b32.xlu0 %v880, 125
        %v883 = vpop.permute.xlu0 %882
        %884 = vrot.lane.b32.xlu0 %v881, 125
        %v885 = vpop.permute.xlu0 %884
        %v886 = vadd.f32 %v780, %v883
        %v887 = vadd.f32 %v781, %v885
        %v888 = vadd.f32 %v886, %v833
        %v889 = vadd.f32 %v887, %v834
        %s890 = sadd.s32 %s195, 85
        %s891 = sld [smem:[#allocation3 + %s890]]
        %v892 = vstv %s891
        %v893 = vadd.f32 %v888, %v892
        %v894 = vadd.f32 %v889, %v892
        %v895 = vld [vmem:[%s179 + $0x3] sm:$0xff]
        %v896 = vld [vmem:[%s179 + $0xb] sm:$0xff]
        %v897 = vtanh.pop %v893
        %v898 = vtanh.pop %v894
        %v899 = vmul.f32 %v897, 3.1415927
        %v900 = vmul.f32 %v898, 3.1415927
        %v901 = vadd.f32 %v899, %v895
        %v902 = vadd.f32 %v900, %v896
        %903 = vst [vmem:[%s184] sm:$0xff] %v901
        %904 = vst [vmem:[%s184 + $0x8] sm:$0xff] %v902
        %p905 = scmp.lt.s32.totalorder %s15, 2
        %s906 = scalar_select %p905, %s15, 2
        %s907 = smul.addr %s906, 2
        %s908 = smul.addr %s907, 8
        %s909 = scalar_lea.vmem %s3, %s908
        // Predicated region
        $region37: #{cnn_dpe_skip_forward.1} parent=31 // pred_check
          %p910 = pneg %p101
        $region38: #{cnn_dpe_skip_forward.1} parent=31 // pred_check_branch
          %912 = sbr.rel (%p910) target = $region40
        $region39: #{cnn_dpe_skip_forward.1} parent=31 // pred_region
          _
        $region40: #{cnn_dpe_skip_forward.1} parent=31 // pred_fallthru
          _
      $region32: #{cnn_dpe_skip_forward.1} parent=5 // pred_fallthru
        _
      %p913 = scmp.le.s32.totalorder 2, %s10
      // Predicated region
      $region41: #{cnn_dpe_skip_forward.1} parent=5 // pred_check
        %p914 = pneg %p913
      $region42: #{cnn_dpe_skip_forward.1} parent=5 // pred_check_branch
        %916 = sbr.rel (%p914) target = $region44
      $region43: #{cnn_dpe_skip_forward.1} parent=5 // pred_region
        %s917 = ssub.s32 %s10, 2
        // Predicated region
        $region45: #{cnn_dpe_skip_forward.1} parent=43 // pred_check
          %p918 = pneg %p107
        $region46: #{cnn_dpe_skip_forward.1} parent=43 // pred_check_branch
          %920 = sbr.rel (%p918) target = $region48
        $region47: #{cnn_dpe_skip_forward.1} parent=43 // pred_region
          %p921 = scmp.lt.s32.totalorder %s16, 2
          %s922 = scalar_select %p921, %s16, 2
          %s923 = smul.addr %s922, 2
          %s924 = smul.addr %s923, 8
          %s925 = scalar_lea.vmem %s3, %s924
        $region48: #{cnn_dpe_skip_forward.1} parent=43 // pred_fallthru
          _
      $region44: #{cnn_dpe_skip_forward.1} parent=5 // pred_fallthru
        _
    $region6: #{cnn_dpe_skip_forward.1} parent=1 // loop_footer
      %s14 = sadd.s32 1, %s10
    $region7: #{cnn_dpe_skip_forward.1} parent=1 // loop_footer_branch
      %9 = sbr.rel target = $region3
    $region8: #{cnn_dpe_skip_forward.1} parent=1 // loop_exit
      _
    %926 = vsyncpa [#allocation4], 1
    %s927 = scalar_lea.sflag [#allocation4], 1
    %928 = vsyncpa %s927, 1

</llo_original>
